<compile_context>
chip_gen: v7x
topology: tpu7x:2x2x1
jax: 0.10.0
libtpu: 0.0.40
codegen_flags: <defaults>
</compile_context>

<pallas_src>
import functools
import math

import jax
import jax.numpy as jnp
from jax.experimental import pallas as pl
from jax.experimental.pallas import tpu as pltpu

NUM_LEVELS = 10          # pe_levels
IN_DIM = 3
PE_DIM = IN_DIM + IN_DIM * 2 * NUM_LEVELS   # 63
PE_PAD = 64              # lane-friendly padded input width
HIDDEN = 256
OUT_DIM = 56
OUT_PAD = 128            # lane-dense padded output width


def _round_up(n, m):
    return ((n + m - 1) // m) * m


def positional_encoding(x):
    """[B, 3] -> [B, 63], same concat order as the torch module."""
    freqs = (2.0 ** jnp.arange(NUM_LEVELS, dtype=jnp.float32)) * math.pi
    parts = [x]
    for i in range(NUM_LEVELS):
        f = freqs[i]
        parts.append(jnp.sin(x * f))
        parts.append(jnp.cos(x * f))
    return jnp.concatenate(parts, axis=-1)


def _multi_mlp_kernel(bc_ref, bv_ref, x_ref,
                      w1, b1, w2, b2, w3, b3, w4, b4, w5, b5,
                      out_ref, *, compute_dtype, act_dtype):
    """One grid step = one row block routed to exactly one cluster's MLP."""
    i = pl.program_id(0)

    @pl.when(bv_ref[i] == 0)          # pure-padding block: write zeros, skip MLP
    def _():
        out_ref[...] = jnp.zeros_like(out_ref)

    @pl.when(bv_ref[i] != 0)
    def _():
        def hidden_layer(h, w, b):
            y = jnp.dot(h.astype(compute_dtype), w[0],
                        preferred_element_type=jnp.float32) + b[0]
            return jnp.tanh(y.astype(act_dtype))

        h = hidden_layer(x_ref[...], w1, b1)
        h = hidden_layer(h, w2, b2)
        h = hidden_layer(h, w3, b3)
        h = hidden_layer(h, w4, b4)
        y = jnp.dot(h.astype(compute_dtype), w5[0],
                    preferred_element_type=jnp.float32) + b5[0]
        out_ref[...] = y.astype(out_ref.dtype)   # single lane-dense store


def multi_mlp(x, cluster_ids, params, *, tb=512,
              compute_dtype=jnp.bfloat16, act_dtype=None):
    """x: [B, 3] float32, cluster_ids: [B] int -> [B, 56] float32.

    compute_dtype: dtype of weights / matmul inputs (bf16 default for v6e/v7x).
    act_dtype:     dtype activations (tanh) run in; defaults to compute_dtype.
                   On v5e use compute_dtype=bf16, act_dtype=f32 (no bf16 EUP).
    """
    if act_dtype is None:
        act_dtype = compute_dtype
    B = x.shape[0]
    C = params["w1"].shape[0]

    x_pe = positional_encoding(x).astype(jnp.float32)             # [B, 63] (glue)
    x_pe = jnp.pad(x_pe, ((0, 0), (0, PE_PAD - PE_DIM)))          # [B, 64]

    # Row tile: large (amortize per-step overhead), but never beyond the batch.
    tb = int(min(tb, _round_up(max(B, 8), 8)))
    tb = _round_up(tb, 8)

    # ---- Grouped (cluster-contiguous, block-aligned) routing ----------------
    cid = cluster_ids.astype(jnp.int32)
    valid = (cid >= 0) & (cid < C)
    cid_c = jnp.where(valid, cid, 0)                              # route bad ids to 0

    counts = jnp.bincount(cid_c, length=C).astype(jnp.int32)      # rows per cluster
    padded_counts = ((counts + tb - 1) // tb) * tb                # block-aligned
    dest_offsets = jnp.cumsum(padded_counts) - padded_counts      # exclusive cumsum

    # Rank of each row within its cluster (via stable sort on cluster id).
    order = jnp.argsort(cid_c)
    cid_sorted = cid_c[order]
    starts = jnp.cumsum(counts) - counts
    rank = jnp.arange(B, dtype=jnp.int32) - starts[cid_sorted]
    dest_sorted = (dest_offsets[cid_sorted] + rank).astype(jnp.int32)
    dest = jnp.zeros((B,), jnp.int32).at[order].set(dest_sorted)  # per ORIGINAL row

    # Static upper bound on the grouped/padded row count.
    total_pad = _round_up(B, tb) + C * tb
    n_blocks = total_pad // tb

    x_grp = jnp.zeros((total_pad, PE_PAD), jnp.float32).at[dest].set(x_pe)
    block_cluster = jnp.zeros((n_blocks,), jnp.int32).at[dest // tb].set(cid_c)
    block_valid = jnp.zeros((n_blocks,), jnp.int32).at[dest // tb].set(1)

    # ---- Weights: pad to lane-dense widths, cast to compute dtype -----------
    wd = jnp.dtype(compute_dtype)
    w1 = jnp.pad(params["w1"], ((0, 0), (0, PE_PAD - PE_DIM), (0, 0))).astype(wd)
    w2 = params["w2"].astype(wd)
    w3 = params["w3"].astype(wd)
    w4 = params["w4"].astype(wd)
    w5 = jnp.pad(params["w5"], ((0, 0), (0, 0), (0, OUT_PAD - OUT_DIM))).astype(wd)
    b1 = params["b1"].astype(jnp.float32)
    b2 = params["b2"].astype(jnp.float32)
    b3 = params["b3"].astype(jnp.float32)
    b4 = params["b4"].astype(jnp.float32)
    b5 = jnp.pad(params["b5"], ((0, 0), (0, 0), (0, OUT_PAD - OUT_DIM))
                 ).astype(jnp.float32)

    # ---- VMEM budget: one cluster's weights + streamed row tiles, x2 buffers.
    per_cluster_w_bytes = ((w1.size + w2.size + w3.size + w4.size + w5.size) // C
                           ) * wd.itemsize
    per_cluster_b_bytes = ((b1.size + b2.size + b3.size + b4.size + b5.size) // C) * 4
    tile_bytes = tb * (PE_PAD + OUT_PAD) * 4
    vmem_needed = 2 * (per_cluster_w_bytes + per_cluster_b_bytes + tile_bytes)
    vmem_limit = int(min(max(vmem_needed + (4 << 20), 16 << 20), 48 << 20))  # v7x-safe

    def wspec(fi, fo):   # one cluster's weight tile, data-dependent index
        return pl.BlockSpec((1, fi, fo), lambda i, bc, bv: (bc[i], 0, 0))

    def bspec(fo):
        return pl.BlockSpec((1, 1, fo), lambda i, bc, bv: (bc[i], 0, 0))

    kernel = functools.partial(_multi_mlp_kernel,
                               compute_dtype=wd, act_dtype=jnp.dtype(act_dtype))

    out_grp = pl.pallas_call(
        kernel,
        out_shape=jax.ShapeDtypeStruct((total_pad, OUT_PAD), jnp.float32),
        grid_spec=pltpu.PrefetchScalarGridSpec(
            num_scalar_prefetch=2,                 # block_cluster, block_valid (SMEM)
            grid=(n_blocks,),
            in_specs=[
                pl.BlockSpec((tb, PE_PAD), lambda i, bc, bv: (i, 0)),   # grouped rows
                wspec(PE_PAD, HIDDEN), bspec(HIDDEN),
                wspec(HIDDEN, HIDDEN), bspec(HIDDEN),
                wspec(HIDDEN, HIDDEN), bspec(HIDDEN),
                wspec(HIDDEN, HIDDEN), bspec(HIDDEN),
                wspec(HIDDEN, OUT_PAD), bspec(OUT_PAD),
            ],
            out_specs=pl.BlockSpec((tb, OUT_PAD), lambda i, bc, bv: (i, 0)),
        ),
        compiler_params=pltpu.CompilerParams(
            dimension_semantics=("parallel",),
            vmem_limit_bytes=vmem_limit),
    )(block_cluster, block_valid, x_grp,
      w1, b1, w2, b2, w3, b3, w4, b4, w5, b5)

    out = out_grp[dest][:, :OUT_DIM]                          # back to original order
    return jnp.where(valid[:, None], out, 0.0)


def init_params(key, num_clusters):
    """Deterministic init matching nn.Linear default (U(-1/sqrt(fan_in), +))."""
    dims = [(PE_DIM, HIDDEN), (HIDDEN, HIDDEN), (HIDDEN, HIDDEN),
            (HIDDEN, HIDDEN), (HIDDEN, OUT_DIM)]
    params = {}
    keys = jax.random.split(key, len(dims))
    for idx, ((fi, fo), k) in enumerate(zip(dims, keys), start=1):
        kw, kb = jax.random.split(k)
        bound = 1.0 / math.sqrt(fi)
        params[f"w{idx}"] = jax.random.uniform(
            kw, (num_clusters, fi, fo), jnp.float32, -bound, bound)
        params[f"b{idx}"] = jax.random.uniform(
            kb, (num_clusters, 1, fo), jnp.float32, -bound, bound)
    return params


def reference(x, cluster_ids, params):
    x_pe = positional_encoding(x)
    C = params["w1"].shape[0]
    ys = []
    for c in range(C):
        h = jnp.tanh(x_pe @ params["w1"][c] + params["b1"][c])
        h = jnp.tanh(h @ params["w2"][c] + params["b2"][c])
        h = jnp.tanh(h @ params["w3"][c] + params["b3"][c])
        h = jnp.tanh(h @ params["w4"][c] + params["b4"][c])
        ys.append(h @ params["w5"][c] + params["b5"][c])
    ys = jnp.stack(ys, axis=0)                                  # [C, B, 56]
    return ys[cluster_ids, jnp.arange(x.shape[0])]


if __name__ == "__main__":
    key = jax.random.PRNGKey(0)
    kx, kc, kp = jax.random.split(key, 3)

    B, NUM_CLUSTERS = 16, 3
    x = jax.random.normal(kx, (B, IN_DIM), jnp.float32)
    cluster_ids = jax.random.randint(kc, (B,), 0, NUM_CLUSTERS, jnp.int32)
    params = init_params(kp, NUM_CLUSTERS)

    ref = reference(x, cluster_ids, params)

    # Exact f32 path.
    out_f32 = jax.block_until_ready(
        multi_mlp(x, cluster_ids, params, compute_dtype=jnp.float32))
    assert out_f32.shape == (B, OUT_DIM)
    assert jnp.allclose(out_f32, ref, rtol=1e-5, atol=1e-5), "f32 mismatch vs reference"

    # Default bf16 path (v6e/v7x): bf16 weights + bf16 tanh, f32 MXU accumulation.
    out_bf16 = jax.block_until_ready(multi_mlp(x, cluster_ids, params))
    assert out_bf16.shape == (B, OUT_DIM)
    assert float(jnp.max(jnp.abs(out_bf16 - ref))) < 0.1, "bf16 mismatch vs reference"

    # v5e-friendly mixed path: bf16 weights, f32 activations/tanh.
    out_mix = jax.block_until_ready(
        multi_mlp(x, cluster_ids, params,
                  compute_dtype=jnp.bfloat16, act_dtype=jnp.float32))
    assert out_mix.shape == (B, OUT_DIM)
    assert float(jnp.max(jnp.abs(out_mix - ref))) < 0.1, "mixed mismatch vs reference"

    print("KERNEL_OK")
</pallas_src>

<mosaic_0001>
module attributes {stable_mosaic.version = 11 : i64} {
  func.func @_multi_mlp_kernel(%arg0: i32, %arg1: memref<4xi32, #tpu.memory_space<smem>>, %arg2: memref<4xi32, #tpu.memory_space<smem>>, %arg3: memref<16x64xf32, #tpu.memory_space<vmem>>, %arg4: memref<1x64x256xf32, #tpu.memory_space<vmem>>, %arg5: memref<1x1x256xf32, #tpu.memory_space<vmem>>, %arg6: memref<1x256x256xf32, #tpu.memory_space<vmem>>, %arg7: memref<1x1x256xf32, #tpu.memory_space<vmem>>, %arg8: memref<1x256x256xf32, #tpu.memory_space<vmem>>, %arg9: memref<1x1x256xf32, #tpu.memory_space<vmem>>, %arg10: memref<1x256x256xf32, #tpu.memory_space<vmem>>, %arg11: memref<1x1x256xf32, #tpu.memory_space<vmem>>, %arg12: memref<1x256x128xf32, #tpu.memory_space<vmem>>, %arg13: memref<1x1x128xf32, #tpu.memory_space<vmem>>, %arg14: memref<16x128xf32, #tpu.memory_space<vmem>>) attributes {dimension_semantics = [#tpu.dimension_semantics<parallel>], iteration_bounds = array<i64: 4>, scalar_prefetch = 2 : i64, scratch_operands = 0 : i64, tpu.core_type = #tpu.core_type<tc>, window_params = [{transform_indices = @transform_0, window_bounds = array<i64: 16, 64>}, {transform_indices = @transform_1, window_bounds = array<i64: 1, 64, 256>}, {transform_indices = @transform_2, window_bounds = array<i64: 1, 1, 256>}, {transform_indices = @transform_3, window_bounds = array<i64: 1, 256, 256>}, {transform_indices = @transform_4, window_bounds = array<i64: 1, 1, 256>}, {transform_indices = @transform_5, window_bounds = array<i64: 1, 256, 256>}, {transform_indices = @transform_6, window_bounds = array<i64: 1, 1, 256>}, {transform_indices = @transform_7, window_bounds = array<i64: 1, 256, 256>}, {transform_indices = @transform_8, window_bounds = array<i64: 1, 1, 256>}, {transform_indices = @transform_9, window_bounds = array<i64: 1, 256, 128>}, {transform_indices = @transform_10, window_bounds = array<i64: 1, 1, 128>}, {transform_indices = @transform_11, window_bounds = array<i64: 16, 128>}]} {
    %0 = arith.index_cast %arg0 : i32 to index
    %1 = memref.load %arg2[%0] : memref<4xi32, #tpu.memory_space<smem>>
    %c0_i32 = arith.constant 0 : i32
    %2 = arith.cmpi eq, %1, %c0_i32 : i32
    %3 = arith.extui %2 : i1 to i32
    %c0_i32_0 = arith.constant 0 : i32
    %4 = arith.cmpi ne, %3, %c0_i32_0 : i32
    scf.if %4 {
      %cst = arith.constant 0.000000e+00 : f32
      %10 = vector.broadcast %cst : f32 to vector<16x128xf32>
      %c0 = arith.constant 0 : index
      %c0_3 = arith.constant 0 : index
      %11 = vector.load %arg14[%c0, %c0_3] : memref<16x128xf32, #tpu.memory_space<vmem>>, vector<16x128xf32>
      tpu.vector_store %arg14[%c0, %c0_3], %10 {strides = array<i32>} : memref<16x128xf32, #tpu.memory_space<vmem>>, vector<16x128xf32>,
    } else {
    }
    %5 = arith.index_cast %arg0 : i32 to index
    %6 = memref.load %arg2[%5] : memref<4xi32, #tpu.memory_space<smem>>
    %c0_i32_1 = arith.constant 0 : i32
    %7 = arith.cmpi ne, %6, %c0_i32_1 : i32
    %8 = arith.extui %7 : i1 to i32
    %c0_i32_2 = arith.constant 0 : i32
    %9 = arith.cmpi ne, %8, %c0_i32_2 : i32
    scf.if %9 {
      %c0 = arith.constant 0 : index
      %c0_3 = arith.constant 0 : index
      %10 = vector.load %arg3[%c0, %c0_3] : memref<16x64xf32, #tpu.memory_space<vmem>>, vector<16x64xf32>
      %c0_4 = arith.constant 0 : index
      %c0_5 = arith.constant 0 : index
      %c0_6 = arith.constant 0 : index
      %11 = vector.load %arg4[%c0_4, %c0_5, %c0_6] : memref<1x64x256xf32, #tpu.memory_space<vmem>>, vector<1x64x256xf32>
      %12 = vector.shape_cast %11 : vector<1x64x256xf32> to vector<64x256xf32>
      %cst = arith.constant dense<0.000000e+00> : vector<16x256xf32>
      %13 = tpu.matmul %10, %12, %cst {dimension_numbers = #tpu.dot_dimension_numbers<[1], [0], [0], [1], [0, 0, 1, 1], [], []>} : vector<16x64xf32>, vector<64x256xf32>, vector<16x256xf32> -> vector<16x256xf32>
      %c0_7 = arith.constant 0 : index
      %c0_8 = arith.constant 0 : index
      %c0_9 = arith.constant 0 : index
      %14 = vector.load %arg5[%c0_7, %c0_8, %c0_9] : memref<1x1x256xf32, #tpu.memory_space<vmem>>, vector<1x1x256xf32>
      %15 = vector.shape_cast %14 : vector<1x1x256xf32> to vector<1x256xf32>
      %16 = vector.broadcast %15 : vector<1x256xf32> to vector<16x256xf32>
      %17 = arith.addf %13, %16 : vector<16x256xf32>
      %18 = math.tanh %17 : vector<16x256xf32>
      %c0_10 = arith.constant 0 : index
      %c0_11 = arith.constant 0 : index
      %c0_12 = arith.constant 0 : index
      %19 = vector.load %arg6[%c0_10, %c0_11, %c0_12] : memref<1x256x256xf32, #tpu.memory_space<vmem>>, vector<1x256x256xf32>
      %20 = vector.shape_cast %19 : vector<1x256x256xf32> to vector<256x256xf32>
      %cst_13 = arith.constant dense<0.000000e+00> : vector<16x256xf32>
      %21 = tpu.matmul %18, %20, %cst_13 {dimension_numbers = #tpu.dot_dimension_numbers<[1], [0], [0], [1], [0, 0, 1, 1], [], []>} : vector<16x256xf32>, vector<256x256xf32>, vector<16x256xf32> -> vector<16x256xf32>
      %c0_14 = arith.constant 0 : index
      %c0_15 = arith.constant 0 : index
      %c0_16 = arith.constant 0 : index
      %22 = vector.load %arg7[%c0_14, %c0_15, %c0_16] : memref<1x1x256xf32, #tpu.memory_space<vmem>>, vector<1x1x256xf32>
      %23 = vector.shape_cast %22 : vector<1x1x256xf32> to vector<1x256xf32>
      %24 = vector.broadcast %23 : vector<1x256xf32> to vector<16x256xf32>
      %25 = arith.addf %21, %24 : vector<16x256xf32>
      %26 = math.tanh %25 : vector<16x256xf32>
      %c0_17 = arith.constant 0 : index
      %c0_18 = arith.constant 0 : index
      %c0_19 = arith.constant 0 : index
      %27 = vector.load %arg8[%c0_17, %c0_18, %c0_19] : memref<1x256x256xf32, #tpu.memory_space<vmem>>, vector<1x256x256xf32>
      %28 = vector.shape_cast %27 : vector<1x256x256xf32> to vector<256x256xf32>
      %cst_20 = arith.constant dense<0.000000e+00> : vector<16x256xf32>
      %29 = tpu.matmul %26, %28, %cst_20 {dimension_numbers = #tpu.dot_dimension_numbers<[1], [0], [0], [1], [0, 0, 1, 1], [], []>} : vector<16x256xf32>, vector<256x256xf32>, vector<16x256xf32> -> vector<16x256xf32>
      %c0_21 = arith.constant 0 : index
      %c0_22 = arith.constant 0 : index
      %c0_23 = arith.constant 0 : index
      %30 = vector.load %arg9[%c0_21, %c0_22, %c0_23] : memref<1x1x256xf32, #tpu.memory_space<vmem>>, vector<1x1x256xf32>
      %31 = vector.shape_cast %30 : vector<1x1x256xf32> to vector<1x256xf32>
      %32 = vector.broadcast %31 : vector<1x256xf32> to vector<16x256xf32>
      %33 = arith.addf %29, %32 : vector<16x256xf32>
      %34 = math.tanh %33 : vector<16x256xf32>
      %c0_24 = arith.constant 0 : index
      %c0_25 = arith.constant 0 : index
      %c0_26 = arith.constant 0 : index
      %35 = vector.load %arg10[%c0_24, %c0_25, %c0_26] : memref<1x256x256xf32, #tpu.memory_space<vmem>>, vector<1x256x256xf32>
      %36 = vector.shape_cast %35 : vector<1x256x256xf32> to vector<256x256xf32>
      %cst_27 = arith.constant dense<0.000000e+00> : vector<16x256xf32>
      %37 = tpu.matmul %34, %36, %cst_27 {dimension_numbers = #tpu.dot_dimension_numbers<[1], [0], [0], [1], [0, 0, 1, 1], [], []>} : vector<16x256xf32>, vector<256x256xf32>, vector<16x256xf32> -> vector<16x256xf32>
      %c0_28 = arith.constant 0 : index
      %c0_29 = arith.constant 0 : index
      %c0_30 = arith.constant 0 : index
      %38 = vector.load %arg11[%c0_28, %c0_29, %c0_30] : memref<1x1x256xf32, #tpu.memory_space<vmem>>, vector<1x1x256xf32>
      %39 = vector.shape_cast %38 : vector<1x1x256xf32> to vector<1x256xf32>
      %40 = vector.broadcast %39 : vector<1x256xf32> to vector<16x256xf32>
      %41 = arith.addf %37, %40 : vector<16x256xf32>
      %42 = math.tanh %41 : vector<16x256xf32>
      %c0_31 = arith.constant 0 : index
      %c0_32 = arith.constant 0 : index
      %c0_33 = arith.constant 0 : index
      %43 = vector.load %arg12[%c0_31, %c0_32, %c0_33] : memref<1x256x128xf32, #tpu.memory_space<vmem>>, vector<1x256x128xf32>
      %44 = vector.shape_cast %43 : vector<1x256x128xf32> to vector<256x128xf32>
      %cst_34 = arith.constant dense<0.000000e+00> : vector<16x128xf32>
      %45 = tpu.matmul %42, %44, %cst_34 {dimension_numbers = #tpu.dot_dimension_numbers<[1], [0], [0], [1], [0, 0, 1, 1], [], []>} : vector<16x256xf32>, vector<256x128xf32>, vector<16x128xf32> -> vector<16x128xf32>
      %c0_35 = arith.constant 0 : index
      %c0_36 = arith.constant 0 : index
      %c0_37 = arith.constant 0 : index
      %46 = vector.load %arg13[%c0_35, %c0_36, %c0_37] : memref<1x1x128xf32, #tpu.memory_space<vmem>>, vector<1x1x128xf32>
      %47 = vector.shape_cast %46 : vector<1x1x128xf32> to vector<1x128xf32>
      %48 = vector.broadcast %47 : vector<1x128xf32> to vector<16x128xf32>
      %49 = arith.addf %45, %48 : vector<16x128xf32>
      %c0_38 = arith.constant 0 : index
      %c0_39 = arith.constant 0 : index
      %50 = vector.load %arg14[%c0_38, %c0_39] : memref<16x128xf32, #tpu.memory_space<vmem>>, vector<16x128xf32>
      tpu.vector_store %arg14[%c0_38, %c0_39], %49 {strides = array<i32>} : memref<16x128xf32, #tpu.memory_space<vmem>>, vector<16x128xf32>,
    } else {
    }
    return
  }
  func.func @transform_0(%arg0: i32, %arg1: memref<4xi32, #tpu.memory_space<smem>>, %arg2: memref<4xi32, #tpu.memory_space<smem>>) -> (i32, i32) {
    %c0_i32 = arith.constant 0 : i32
    %c0_i32_0 = arith.constant 0 : i32
    return %arg0, %c0_i32 : i32, i32
  }
  func.func @transform_1(%arg0: i32, %arg1: memref<4xi32, #tpu.memory_space<smem>>, %arg2: memref<4xi32, #tpu.memory_space<smem>>) -> (i32, i32, i32) {
    %0 = arith.index_cast %arg0 : i32 to index
    %1 = memref.load %arg1[%0] : memref<4xi32, #tpu.memory_space<smem>>
    %c0_i32 = arith.constant 0 : i32
    %c0_i32_0 = arith.constant 0 : i32
    %c0_i32_1 = arith.constant 0 : i32
    return %1, %c0_i32, %c0_i32_0 : i32, i32, i32
  }
  func.func @transform_2(%arg0: i32, %arg1: memref<4xi32, #tpu.memory_space<smem>>, %arg2: memref<4xi32, #tpu.memory_space<smem>>) -> (i32, i32, i32) {
    %0 = arith.index_cast %arg0 : i32 to index
    %1 = memref.load %arg1[%0] : memref<4xi32, #tpu.memory_space<smem>>
    %c0_i32 = arith.constant 0 : i32
    %c0_i32_0 = arith.constant 0 : i32
    %c0_i32_1 = arith.constant 0 : i32
    return %1, %c0_i32, %c0_i32_0 : i32, i32, i32
  }
  func.func @transform_3(%arg0: i32, %arg1: memref<4xi32, #tpu.memory_space<smem>>, %arg2: memref<4xi32, #tpu.memory_space<smem>>) -> (i32, i32, i32) {
    %0 = arith.index_cast %arg0 : i32 to index
    %1 = memref.load %arg1[%0] : memref<4xi32, #tpu.memory_space<smem>>
    %c0_i32 = arith.constant 0 : i32
    %c0_i32_0 = arith.constant 0 : i32
    %c0_i32_1 = arith.constant 0 : i32
    return %1, %c0_i32, %c0_i32_0 : i32, i32, i32
  }
  func.func @transform_4(%arg0: i32, %arg1: memref<4xi32, #tpu.memory_space<smem>>, %arg2: memref<4xi32, #tpu.memory_space<smem>>) -> (i32, i32, i32) {
    %0 = arith.index_cast %arg0 : i32 to index
    %1 = memref.load %arg1[%0] : memref<4xi32, #tpu.memory_space<smem>>
    %c0_i32 = arith.constant 0 : i32
    %c0_i32_0 = arith.constant 0 : i32
    %c0_i32_1 = arith.constant 0 : i32
    return %1, %c0_i32, %c0_i32_0 : i32, i32, i32
  }
  func.func @transform_5(%arg0: i32, %arg1: memref<4xi32, #tpu.memory_space<smem>>, %arg2: memref<4xi32, #tpu.memory_space<smem>>) -> (i32, i32, i32) {
    %0 = arith.index_cast %arg0 : i32 to index
    %1 = memref.load %arg1[%0] : memref<4xi32, #tpu.memory_space<smem>>
    %c0_i32 = arith.constant 0 : i32
    %c0_i32_0 = arith.constant 0 : i32
    %c0_i32_1 = arith.constant 0 : i32
    return %1, %c0_i32, %c0_i32_0 : i32, i32, i32
  }
  func.func @transform_6(%arg0: i32, %arg1: memref<4xi32, #tpu.memory_space<smem>>, %arg2: memref<4xi32, #tpu.memory_space<smem>>) -> (i32, i32, i32) {
    %0 = arith.index_cast %arg0 : i32 to index
    %1 = memref.load %arg1[%0] : memref<4xi32, #tpu.memory_space<smem>>
    %c0_i32 = arith.constant 0 : i32
    %c0_i32_0 = arith.constant 0 : i32
    %c0_i32_1 = arith.constant 0 : i32
    return %1, %c0_i32, %c0_i32_0 : i32, i32, i32
  }
  func.func @transform_7(%arg0: i32, %arg1: memref<4xi32, #tpu.memory_space<smem>>, %arg2: memref<4xi32, #tpu.memory_space<smem>>) -> (i32, i32, i32) {
    %0 = arith.index_cast %arg0 : i32 to index
    %1 = memref.load %arg1[%0] : memref<4xi32, #tpu.memory_space<smem>>
    %c0_i32 = arith.constant 0 : i32
    %c0_i32_0 = arith.constant 0 : i32
    %c0_i32_1 = arith.constant 0 : i32
    return %1, %c0_i32, %c0_i32_0 : i32, i32, i32
  }
  func.func @transform_8(%arg0: i32, %arg1: memref<4xi32, #tpu.memory_space<smem>>, %arg2: memref<4xi32, #tpu.memory_space<smem>>) -> (i32, i32, i32) {
    %0 = arith.index_cast %arg0 : i32 to index
    %1 = memref.load %arg1[%0] : memref<4xi32, #tpu.memory_space<smem>>
    %c0_i32 = arith.constant 0 : i32
    %c0_i32_0 = arith.constant 0 : i32
    %c0_i32_1 = arith.constant 0 : i32
    return %1, %c0_i32, %c0_i32_0 : i32, i32, i32
  }
  func.func @transform_9(%arg0: i32, %arg1: memref<4xi32, #tpu.memory_space<smem>>, %arg2: memref<4xi32, #tpu.memory_space<smem>>) -> (i32, i32, i32) {
    %0 = arith.index_cast %arg0 : i32 to index
    %1 = memref.load %arg1[%0] : memref<4xi32, #tpu.memory_space<smem>>
    %c0_i32 = arith.constant 0 : i32
    %c0_i32_0 = arith.constant 0 : i32
    %c0_i32_1 = arith.constant 0 : i32
    return %1, %c0_i32, %c0_i32_0 : i32, i32, i32
  }
  func.func @transform_10(%arg0: i32, %arg1: memref<4xi32, #tpu.memory_space<smem>>, %arg2: memref<4xi32, #tpu.memory_space<smem>>) -> (i32, i32, i32) {
    %0 = arith.index_cast %arg0 : i32 to index
    %1 = memref.load %arg1[%0] : memref<4xi32, #tpu.memory_space<smem>>
    %c0_i32 = arith.constant 0 : i32
    %c0_i32_0 = arith.constant 0 : i32
    %c0_i32_1 = arith.constant 0 : i32
    return %1, %c0_i32, %c0_i32_0 : i32, i32, i32
  }
  func.func @transform_11(%arg0: i32, %arg1: memref<4xi32, #tpu.memory_space<smem>>, %arg2: memref<4xi32, #tpu.memory_space<smem>>) -> (i32, i32) {
    %c0_i32 = arith.constant 0 : i32
    %c0_i32_0 = arith.constant 0 : i32
    return %arg0, %c0_i32 : i32, i32
  }
}

</mosaic_0001>

<llo_original>
// kernel: tpu_custom_call.1
$region0: #{tpu_custom_call.1}
  #allocation0 [shape = 'u32[]', space=smem, size = 0x4, offset = 0x4, fixed_abs, tag = 'smem constant byte address 0x4 - core index']
  #allocation1 [shape = 'u32[144,128]{1,0:T(1,128)}', space=vmem, size = 0x12000, scoped, tag = 'internal scratch']
  #allocation2 [shape = 's32[1]{0}', space=sflag, size = 0x4, scoped, tag = 'scoped memory for tpu_custom_call.1']
  #allocation3 [shape = 'u8[512]{0}', space=smem, size = 0x200, scoped, tag = 'prefetched SMEM operand 0']
  #allocation4 [shape = 'u8[512]{0}', space=smem, size = 0x200, scoped, tag = 'prefetched SMEM operand 1']
  %s0 = inlined_call_operand.hbm [shape: s32[4], index: 0, kind: input, shape index: {}]
  %s1 = inlined_call_operand.hbm [shape: s32[4], index: 1, kind: input, shape index: {}]
  %s2 = inlined_call_operand.hbm [shape: f32[64,64], index: 2, kind: input, shape index: {}]
  %s3 = inlined_call_operand.hbm [shape: f32[3,64,256], index: 3, kind: input, shape index: {}]
  %s4 = inlined_call_operand.vmem [shape: f32[3,1,256], index: 4, kind: input, shape index: {}]
  %s5 = inlined_call_operand.hbm [shape: f32[3,256,256], index: 5, kind: input, shape index: {}]
  %s6 = inlined_call_operand.vmem [shape: f32[3,1,256], index: 6, kind: input, shape index: {}]
  %s7 = inlined_call_operand.hbm [shape: f32[3,256,256], index: 7, kind: input, shape index: {}]
  %s8 = inlined_call_operand.vmem [shape: f32[3,1,256], index: 8, kind: input, shape index: {}]
  %s9 = inlined_call_operand.hbm [shape: f32[3,256,256], index: 9, kind: input, shape index: {}]
  %s10 = inlined_call_operand.vmem [shape: f32[3,1,256], index: 10, kind: input, shape index: {}]
  %s11 = inlined_call_operand.hbm [shape: f32[3,256,128], index: 11, kind: input, shape index: {}]
  %s12 = inlined_call_operand.vmem [shape: f32[3,1,128], index: 12, kind: input, shape index: {}]
  %s13 = inlined_call_operand.hbm [shape: f32[64,128], index: 13, kind: output, shape index: {}]
  %s14 = sld [smem:[#allocation0]]
  $region109: #{tpu_custom_call.1} parent=0
    _
  %s16 = ssub.s32 1, %s14
  %s17 = scalar_select 0, %s16, %s14
  %19 = dma.hbm_to_smem %s0, 16, [#allocation3], [#allocation2]
  %21 = dma.hbm_to_smem %s1, 16, [#allocation4], [#allocation2]
  %22 = dma.done [#allocation2], 32
  %23 = sfence
  $region1: #{tpu_custom_call.1} parent=0
    #allocation5 [shape = 'u8[16384]{0}', space=vmem, size = 0x4000, scoped, tag = 'input window, operand 2']
    #allocation6 [shape = 's32[2]{0}', space=sflag, size = 0x8, scoped, tag = 'scoped memory for tpu_custom_call.1']
    #allocation7 [shape = 's32[2]{0}', space=sflag, size = 0x8, scoped, tag = 'scoped memory for tpu_custom_call.1']
    #allocation8 [shape = 'u8[131072]{0}', space=vmem, size = 0x20000, scoped, tag = 'input window, operand 3']
    #allocation9 [shape = 's32[2]{0}', space=sflag, size = 0x8, scoped, tag = 'scoped memory for tpu_custom_call.1']
    #allocation10 [shape = 'u8[524288]{0}', space=vmem, size = 0x80000, scoped, tag = 'input window, operand 5']
    #allocation11 [shape = 'u8[524288]{0}', space=vmem, size = 0x80000, scoped, tag = 'input window, operand 7']
    #allocation12 [shape = 's32[2]{0}', space=sflag, size = 0x8, scoped, tag = 'scoped memory for tpu_custom_call.1']
    #allocation13 [shape = 'u8[524288]{0}', space=vmem, size = 0x80000, scoped, tag = 'input window, operand 9']
    #allocation14 [shape = 'u8[262144]{0}', space=vmem, size = 0x40000, scoped, tag = 'input window, operand 11']
    #allocation15 [shape = 's32[2]{0}', space=sflag, size = 0x8, scoped, tag = 'scoped memory for tpu_custom_call.1']
    #allocation16 [shape = 'u8[16384]{0}', space=vmem, size = 0x4000, scoped, tag = 'output window, operand 0']
    %24 = vsyncpa [#allocation6], 0
    %s25 = scalar_lea.sflag [#allocation6], 1
    %26 = vsyncpa %s25, 0
    %27 = vsyncpa [#allocation9], 0
    %s28 = scalar_lea.sflag [#allocation9], 1
    %29 = vsyncpa %s28, 0
    %30 = vsyncpa [#allocation12], 0
    %s31 = scalar_lea.sflag [#allocation12], 1
    %32 = vsyncpa %s31, 0
    %33 = vsyncpa [#allocation15], 0
    %s34 = scalar_lea.sflag [#allocation15], 1
    %35 = vsyncpa %s34, 0
    %36 = vsyncpa [#allocation7], 0
    %s37 = scalar_lea.sflag [#allocation7], 1
    %38 = vsyncpa %s37, 0
    loop: start=0, step=1, limit=6
    $region2: #{tpu_custom_call.1} parent=1 // loop_pre_header
      _
    $region3: #{tpu_custom_call.1} parent=1 // loop_header
      %s40 = sphi 0, %s44
      %p41 = scmp.ge.s32.totalorder %s40, 6
      %s50 = sphi 0, %s52
      %s53 = sphi 0, %s50
      %s54 = sphi 0, %s53
      %s70 = sphi 0, %s54
      %s78 = sphi 0, %s80
      %s81 = sphi 0, %s78
      %s82 = sphi 0, %s81
      %s98 = sphi 0, %s82
      %s106 = sphi 0, %s108
      %s109 = sphi 0, %s106
      %s110 = sphi 0, %s109
      %s126 = sphi 0, %s110
      %s134 = sphi 0, %s136
      %s137 = sphi 0, %s134
      %s138 = sphi 0, %s137
      %s154 = sphi 0, %s138
      %s162 = sphi 0, %s164
      %s165 = sphi 0, %s162
      %s166 = sphi 0, %s165
      %s182 = sphi 0, %s166
      %s190 = sphi 0, %s192
      %s193 = sphi 0, %s190
      %s194 = sphi 0, %s193
      %s210 = sphi 0, %s194
      %s218 = sphi 0, %s220
      %s221 = sphi 0, %s218
      %s222 = sphi 0, %s221
      %s238 = sphi 0, %s222
      %s246 = sphi 0, %s248
      %s249 = sphi 0, %s246
      %s250 = sphi 0, %s249
      %s266 = sphi 0, %s250
      %s274 = sphi 0, %s276
      %s277 = sphi 0, %s274
      %s278 = sphi 0, %s277
      %s294 = sphi 0, %s278
      %s302 = sphi 0, %s304
      %s305 = sphi 0, %s302
      %s306 = sphi 0, %s305
      %s322 = sphi 0, %s306
      %s330 = sphi 0, %s332
      %s333 = sphi 0, %s330
      %s334 = sphi 0, %s333
      %s350 = sphi 0, %s334
      %s356 = sphi 0, %s358
      %s359 = sphi 0, %s356
      %s360 = sphi 0, %s359
      %s376 = sphi 0, %s360
    $region4: #{tpu_custom_call.1} parent=1 // loop_header_branch
      %43 = sbr.rel (%p41) target = $region8
    $region5: #{tpu_custom_call.1} parent=1 // loop_body
      %s45 = ssub.s32 %s40, 1
      %s46 = ssub.s32 %s40, 2
      %s47 = sadd.s32 %s40, 1
      %s48 = ssub.s32 %s40, %s47
      %p49 = scmp.eq.s32.totalorder %s48, 0
      %s51 = sadd.s32 %s50, 1
      %s52 = scalar_select %p49, %s50, %s51
      %p55 = pneg %p49
      %p56 = scmp.eq.s32.totalorder %s40, 3
      %p57 = por %p55, %p56
      %p58 = scmp.ne.s32.totalorder %s50, %s53
      %p59 = scmp.eq.s32.totalorder %s40, 0
      %p60 = por %p58, %p59
      %p61 = scmp.ne.s32.totalorder %s50, %s53
      %p62 = scmp.eq.s32.totalorder %s45, 3
      %p63 = por %p61, %p62
      %p64 = scmp.ne.s32.totalorder %s53, %s54
      %p65 = scmp.eq.s32.totalorder %s45, 0
      %p66 = por %p64, %p65
      %p67 = scmp.ne.s32.totalorder %s53, %s54
      %p68 = scmp.eq.s32.totalorder %s46, 3
      %p69 = por %p67, %p68
      %p71 = scmp.ne.s32.totalorder %s54, %s70
      %p72 = scmp.eq.s32.totalorder %s46, 0
      %p73 = por %p71, %p72
      %s74 = sld [smem:[#allocation3 + %s40]]
      %s75 = sld [smem:[#allocation3 + %s47]]
      %s76 = ssub.s32 %s74, %s75
      %p77 = scmp.eq.s32.totalorder %s76, 0
      %s79 = sadd.s32 %s78, 1
      %s80 = scalar_select %p77, %s78, %s79
      %p83 = pneg %p77
      %p84 = scmp.eq.s32.totalorder %s40, 3
      %p85 = por %p83, %p84
      %p86 = scmp.ne.s32.totalorder %s78, %s81
      %p87 = scmp.eq.s32.totalorder %s40, 0
      %p88 = por %p86, %p87
      %p89 = scmp.ne.s32.totalorder %s78, %s81
      %p90 = scmp.eq.s32.totalorder %s45, 3
      %p91 = por %p89, %p90
      %p92 = scmp.ne.s32.totalorder %s81, %s82
      %p93 = scmp.eq.s32.totalorder %s45, 0
      %p94 = por %p92, %p93
      %p95 = scmp.ne.s32.totalorder %s81, %s82
      %p96 = scmp.eq.s32.totalorder %s46, 3
      %p97 = por %p95, %p96
      %p99 = scmp.ne.s32.totalorder %s82, %s98
      %p100 = scmp.eq.s32.totalorder %s46, 0
      %p101 = por %p99, %p100
      %s102 = sld [smem:[#allocation3 + %s40]]
      %s103 = sld [smem:[#allocation3 + %s47]]
      %s104 = ssub.s32 %s102, %s103
      %p105 = scmp.eq.s32.totalorder %s104, 0
      %s107 = sadd.s32 %s106, 1
      %s108 = scalar_select %p105, %s106, %s107
      %p111 = pneg %p105
      %p112 = scmp.eq.s32.totalorder %s40, 3
      %p113 = por %p111, %p112
      %p114 = scmp.ne.s32.totalorder %s106, %s109
      %p115 = scmp.eq.s32.totalorder %s40, 0
      %p116 = por %p114, %p115
      %p117 = scmp.ne.s32.totalorder %s106, %s109
      %p118 = scmp.eq.s32.totalorder %s45, 3
      %p119 = por %p117, %p118
      %p120 = scmp.ne.s32.totalorder %s109, %s110
      %p121 = scmp.eq.s32.totalorder %s45, 0
      %p122 = por %p120, %p121
      %p123 = scmp.ne.s32.totalorder %s109, %s110
      %p124 = scmp.eq.s32.totalorder %s46, 3
      %p125 = por %p123, %p124
      %p127 = scmp.ne.s32.totalorder %s110, %s126
      %p128 = scmp.eq.s32.totalorder %s46, 0
      %p129 = por %p127, %p128
      %s130 = sld [smem:[#allocation3 + %s40]]
      %s131 = sld [smem:[#allocation3 + %s47]]
      %s132 = ssub.s32 %s130, %s131
      %p133 = scmp.eq.s32.totalorder %s132, 0
      %s135 = sadd.s32 %s134, 1
      %s136 = scalar_select %p133, %s134, %s135
      %p139 = pneg %p133
      %p140 = scmp.eq.s32.totalorder %s40, 3
      %p141 = por %p139, %p140
      %p142 = scmp.ne.s32.totalorder %s134, %s137
      %p143 = scmp.eq.s32.totalorder %s40, 0
      %p144 = por %p142, %p143
      %p145 = scmp.ne.s32.totalorder %s134, %s137
      %p146 = scmp.eq.s32.totalorder %s45, 3
      %p147 = por %p145, %p146
      %p148 = scmp.ne.s32.totalorder %s137, %s138
      %p149 = scmp.eq.s32.totalorder %s45, 0
      %p150 = por %p148, %p149
      %p151 = scmp.ne.s32.totalorder %s137, %s138
      %p152 = scmp.eq.s32.totalorder %s46, 3
      %p153 = por %p151, %p152
      %p155 = scmp.ne.s32.totalorder %s138, %s154
      %p156 = scmp.eq.s32.totalorder %s46, 0
      %p157 = por %p155, %p156
      %s158 = sld [smem:[#allocation3 + %s40]]
      %s159 = sld [smem:[#allocation3 + %s47]]
      %s160 = ssub.s32 %s158, %s159
      %p161 = scmp.eq.s32.totalorder %s160, 0
      %s163 = sadd.s32 %s162, 1
      %s164 = scalar_select %p161, %s162, %s163
      %p167 = pneg %p161
      %p168 = scmp.eq.s32.totalorder %s40, 3
      %p169 = por %p167, %p168
      %p170 = scmp.ne.s32.totalorder %s162, %s165
      %p171 = scmp.eq.s32.totalorder %s40, 0
      %p172 = por %p170, %p171
      %p173 = scmp.ne.s32.totalorder %s162, %s165
      %p174 = scmp.eq.s32.totalorder %s45, 3
      %p175 = por %p173, %p174
      %p176 = scmp.ne.s32.totalorder %s165, %s166
      %p177 = scmp.eq.s32.totalorder %s45, 0
      %p178 = por %p176, %p177
      %p179 = scmp.ne.s32.totalorder %s165, %s166
      %p180 = scmp.eq.s32.totalorder %s46, 3
      %p181 = por %p179, %p180
      %p183 = scmp.ne.s32.totalorder %s166, %s182
      %p184 = scmp.eq.s32.totalorder %s46, 0
      %p185 = por %p183, %p184
      %s186 = sld [smem:[#allocation3 + %s40]]
      %s187 = sld [smem:[#allocation3 + %s47]]
      %s188 = ssub.s32 %s186, %s187
      %p189 = scmp.eq.s32.totalorder %s188, 0
      %s191 = sadd.s32 %s190, 1
      %s192 = scalar_select %p189, %s190, %s191
      %p195 = pneg %p189
      %p196 = scmp.eq.s32.totalorder %s40, 3
      %p197 = por %p195, %p196
      %p198 = scmp.ne.s32.totalorder %s190, %s193
      %p199 = scmp.eq.s32.totalorder %s40, 0
      %p200 = por %p198, %p199
      %p201 = scmp.ne.s32.totalorder %s190, %s193
      %p202 = scmp.eq.s32.totalorder %s45, 3
      %p203 = por %p201, %p202
      %p204 = scmp.ne.s32.totalorder %s193, %s194
      %p205 = scmp.eq.s32.totalorder %s45, 0
      %p206 = por %p204, %p205
      %p207 = scmp.ne.s32.totalorder %s193, %s194
      %p208 = scmp.eq.s32.totalorder %s46, 3
      %p209 = por %p207, %p208
      %p211 = scmp.ne.s32.totalorder %s194, %s210
      %p212 = scmp.eq.s32.totalorder %s46, 0
      %p213 = por %p211, %p212
      %s214 = sld [smem:[#allocation3 + %s40]]
      %s215 = sld [smem:[#allocation3 + %s47]]
      %s216 = ssub.s32 %s214, %s215
      %p217 = scmp.eq.s32.totalorder %s216, 0
      %s219 = sadd.s32 %s218, 1
      %s220 = scalar_select %p217, %s218, %s219
      %p223 = pneg %p217
      %p224 = scmp.eq.s32.totalorder %s40, 3
      %p225 = por %p223, %p224
      %p226 = scmp.ne.s32.totalorder %s218, %s221
      %p227 = scmp.eq.s32.totalorder %s40, 0
      %p228 = por %p226, %p227
      %p229 = scmp.ne.s32.totalorder %s218, %s221
      %p230 = scmp.eq.s32.totalorder %s45, 3
      %p231 = por %p229, %p230
      %p232 = scmp.ne.s32.totalorder %s221, %s222
      %p233 = scmp.eq.s32.totalorder %s45, 0
      %p234 = por %p232, %p233
      %p235 = scmp.ne.s32.totalorder %s221, %s222
      %p236 = scmp.eq.s32.totalorder %s46, 3
      %p237 = por %p235, %p236
      %p239 = scmp.ne.s32.totalorder %s222, %s238
      %p240 = scmp.eq.s32.totalorder %s46, 0
      %p241 = por %p239, %p240
      %s242 = sld [smem:[#allocation3 + %s40]]
      %s243 = sld [smem:[#allocation3 + %s47]]
      %s244 = ssub.s32 %s242, %s243
      %p245 = scmp.eq.s32.totalorder %s244, 0
      %s247 = sadd.s32 %s246, 1
      %s248 = scalar_select %p245, %s246, %s247
      %p251 = pneg %p245
      %p252 = scmp.eq.s32.totalorder %s40, 3
      %p253 = por %p251, %p252
      %p254 = scmp.ne.s32.totalorder %s246, %s249
      %p255 = scmp.eq.s32.totalorder %s40, 0
      %p256 = por %p254, %p255
      %p257 = scmp.ne.s32.totalorder %s246, %s249
      %p258 = scmp.eq.s32.totalorder %s45, 3
      %p259 = por %p257, %p258
      %p260 = scmp.ne.s32.totalorder %s249, %s250
      %p261 = scmp.eq.s32.totalorder %s45, 0
      %p262 = por %p260, %p261
      %p263 = scmp.ne.s32.totalorder %s249, %s250
      %p264 = scmp.eq.s32.totalorder %s46, 3
      %p265 = por %p263, %p264
      %p267 = scmp.ne.s32.totalorder %s250, %s266
      %p268 = scmp.eq.s32.totalorder %s46, 0
      %p269 = por %p267, %p268
      %s270 = sld [smem:[#allocation3 + %s40]]
      %s271 = sld [smem:[#allocation3 + %s47]]
      %s272 = ssub.s32 %s270, %s271
      %p273 = scmp.eq.s32.totalorder %s272, 0
      %s275 = sadd.s32 %s274, 1
      %s276 = scalar_select %p273, %s274, %s275
      %p279 = pneg %p273
      %p280 = scmp.eq.s32.totalorder %s40, 3
      %p281 = por %p279, %p280
      %p282 = scmp.ne.s32.totalorder %s274, %s277
      %p283 = scmp.eq.s32.totalorder %s40, 0
      %p284 = por %p282, %p283
      %p285 = scmp.ne.s32.totalorder %s274, %s277
      %p286 = scmp.eq.s32.totalorder %s45, 3
      %p287 = por %p285, %p286
      %p288 = scmp.ne.s32.totalorder %s277, %s278
      %p289 = scmp.eq.s32.totalorder %s45, 0
      %p290 = por %p288, %p289
      %p291 = scmp.ne.s32.totalorder %s277, %s278
      %p292 = scmp.eq.s32.totalorder %s46, 3
      %p293 = por %p291, %p292
      %p295 = scmp.ne.s32.totalorder %s278, %s294
      %p296 = scmp.eq.s32.totalorder %s46, 0
      %p297 = por %p295, %p296
      %s298 = sld [smem:[#allocation3 + %s40]]
      %s299 = sld [smem:[#allocation3 + %s47]]
      %s300 = ssub.s32 %s298, %s299
      %p301 = scmp.eq.s32.totalorder %s300, 0
      %s303 = sadd.s32 %s302, 1
      %s304 = scalar_select %p301, %s302, %s303
      %p307 = pneg %p301
      %p308 = scmp.eq.s32.totalorder %s40, 3
      %p309 = por %p307, %p308
      %p310 = scmp.ne.s32.totalorder %s302, %s305
      %p311 = scmp.eq.s32.totalorder %s40, 0
      %p312 = por %p310, %p311
      %p313 = scmp.ne.s32.totalorder %s302, %s305
      %p314 = scmp.eq.s32.totalorder %s45, 3
      %p315 = por %p313, %p314
      %p316 = scmp.ne.s32.totalorder %s305, %s306
      %p317 = scmp.eq.s32.totalorder %s45, 0
      %p318 = por %p316, %p317
      %p319 = scmp.ne.s32.totalorder %s305, %s306
      %p320 = scmp.eq.s32.totalorder %s46, 3
      %p321 = por %p319, %p320
      %p323 = scmp.ne.s32.totalorder %s306, %s322
      %p324 = scmp.eq.s32.totalorder %s46, 0
      %p325 = por %p323, %p324
      %s326 = sld [smem:[#allocation3 + %s40]]
      %s327 = sld [smem:[#allocation3 + %s47]]
      %s328 = ssub.s32 %s326, %s327
      %p329 = scmp.eq.s32.totalorder %s328, 0
      %s331 = sadd.s32 %s330, 1
      %s332 = scalar_select %p329, %s330, %s331
      %p335 = pneg %p329
      %p336 = scmp.eq.s32.totalorder %s40, 3
      %p337 = por %p335, %p336
      %p338 = scmp.ne.s32.totalorder %s330, %s333
      %p339 = scmp.eq.s32.totalorder %s40, 0
      %p340 = por %p338, %p339
      %p341 = scmp.ne.s32.totalorder %s330, %s333
      %p342 = scmp.eq.s32.totalorder %s45, 3
      %p343 = por %p341, %p342
      %p344 = scmp.ne.s32.totalorder %s333, %s334
      %p345 = scmp.eq.s32.totalorder %s45, 0
      %p346 = por %p344, %p345
      %p347 = scmp.ne.s32.totalorder %s333, %s334
      %p348 = scmp.eq.s32.totalorder %s46, 3
      %p349 = por %p347, %p348
      %p351 = scmp.ne.s32.totalorder %s334, %s350
      %p352 = scmp.eq.s32.totalorder %s46, 0
      %p353 = por %p351, %p352
      %s354 = ssub.s32 %s40, %s47
      %p355 = scmp.eq.s32.totalorder %s354, 0
      %s357 = sadd.s32 %s356, 1
      %s358 = scalar_select %p355, %s356, %s357
      %p361 = pneg %p355
      %p362 = scmp.eq.s32.totalorder %s40, 3
      %p363 = por %p361, %p362
      %p364 = scmp.ne.s32.totalorder %s356, %s359
      %p365 = scmp.eq.s32.totalorder %s40, 0
      %p366 = por %p364, %p365
      %p367 = scmp.ne.s32.totalorder %s356, %s359
      %p368 = scmp.eq.s32.totalorder %s45, 3
      %p369 = por %p367, %p368
      %p370 = scmp.ne.s32.totalorder %s359, %s360
      %p371 = scmp.eq.s32.totalorder %s45, 0
      %p372 = por %p370, %p371
      %p373 = scmp.ne.s32.totalorder %s359, %s360
      %p374 = scmp.eq.s32.totalorder %s46, 3
      %p375 = por %p373, %p374
      %p377 = scmp.ne.s32.totalorder %s360, %s376
      %p378 = scmp.eq.s32.totalorder %s46, 0
      %p379 = por %p377, %p378
      %p380 = scmp.le.s32.totalorder 1, %s40
      %p381 = scmp.lt.s32.totalorder %s40, 5
      %p382 = pnand %p380, %p381
      %p383 = pneg %p382
      // Predicated region
      $region9: #{tpu_custom_call.1} parent=5 // pred_check
        _
      $region10: #{tpu_custom_call.1} parent=5 // pred_check_branch
        %385 = sbr.rel (%p382) target = $region12
      $region11: #{tpu_custom_call.1} parent=5 // pred_region
        %s386 = ssub.s32 %s40, 1
      $region12: #{tpu_custom_call.1} parent=5 // pred_fallthru
        _
      %p387 = scmp.lt.s32.totalorder %s40, 4
      // Predicated region
      $region13: #{tpu_custom_call.1} parent=5 // pred_check
        %p388 = pneg %p387
      $region14: #{tpu_custom_call.1} parent=5 // pred_check_branch
        %390 = sbr.rel (%p388) target = $region16
      $region15: #{tpu_custom_call.1} parent=5 // pred_region
        // Predicated region
        $region17: #{tpu_custom_call.1} parent=15 // pred_check
          %p391 = pneg %p60
        $region18: #{tpu_custom_call.1} parent=15 // pred_check_branch
          %393 = sbr.rel (%p391) target = $region20
        $region19: #{tpu_custom_call.1} parent=15 // pred_region
          %s394 = sand.u32 %s50, 1
          %s395 = scalar_lea.sflag [#allocation6], %s394
          %s396 = sand.u32 %s50, 1
          %s397 = smul.addr %s396, 16
          %s398 = scalar_lea.vmem [#allocation5], %s397
          %s399 = smul.u32 2, %s40
          %s401 = ssub.s32 256, 256
          %402 = vsyncadd %s395, %s401
          %s403 = smul.addr %s399, 128
          %s404 = scalar_lea.hbm %s2, %s403
          %s405 = sshll.u32 %s398, 4
          %s406 = int_to_ptr.vmem [resolvable:$true] %s405
          %411 = dma.hbm_to_vmem [thread:$0]  %s404, 256, %s406, %s395, 128, 128, 8
        $region20: #{tpu_custom_call.1} parent=15 // pred_fallthru
          _
        // Predicated region
        $region21: #{tpu_custom_call.1} parent=15 // pred_check
          %p412 = pneg %p88
        $region22: #{tpu_custom_call.1} parent=15 // pred_check_branch
          %414 = sbr.rel (%p412) target = $region24
        $region23: #{tpu_custom_call.1} parent=15 // pred_region
          %s415 = sand.u32 %s40, 1
          %s416 = scalar_lea.sflag [#allocation9], %s415
          %s417 = sand.u32 %s78, 1
          %s418 = smul.addr %s417, 128
          %s419 = scalar_lea.vmem [#allocation8], %s418
          %s420 = sld [smem:[#allocation3 + %s40]]
          %s422 = ssub.s32 2048, 2048
          %423 = vsyncadd %s416, %s422
          %s424 = smul.addr %s420, 16
          %s425 = smul.addr %s424, 128
          %s426 = scalar_lea.hbm %s3, %s425
          %s427 = sshll.u32 %s419, 4
          %s428 = int_to_ptr.vmem [resolvable:$true] %s427
          %433 = dma.hbm_to_vmem [thread:$0]  %s426, 2048, %s428, %s416, 256, 256, 16
        $region24: #{tpu_custom_call.1} parent=15 // pred_fallthru
          _
        // Predicated region
        $region25: #{tpu_custom_call.1} parent=15 // pred_check
          %p434 = pneg %p116
        $region26: #{tpu_custom_call.1} parent=15 // pred_check_branch
          %436 = sbr.rel (%p434) target = $region28
        $region27: #{tpu_custom_call.1} parent=15 // pred_region
          %s437 = sld [smem:[#allocation3 + %s40]]
          %p438 = scmp.lt.s32.totalorder %s437, 2
          %s439 = scalar_select %p438, %s437, 2
          %s440 = smul.addr %s439, 2
          %s441 = scalar_lea.vmem %s4, %s440
          %s442 = sld [smem:[#allocation3 + %s40]]
        $region28: #{tpu_custom_call.1} parent=15 // pred_fallthru
          _
        // Predicated region
        $region29: #{tpu_custom_call.1} parent=15 // pred_check
          %p443 = pneg %p144
        $region30: #{tpu_custom_call.1} parent=15 // pred_check_branch
          %445 = sbr.rel (%p443) target = $region32
        $region31: #{tpu_custom_call.1} parent=15 // pred_region
          %s446 = sand.u32 %s40, 1
          %s447 = scalar_lea.sflag [#allocation9], %s446
          %s448 = sand.u32 %s134, 1
          %s449 = smul.addr %s448, 512
          %s450 = scalar_lea.vmem [#allocation10], %s449
          %s451 = sld [smem:[#allocation3 + %s40]]
          %s453 = ssub.s32 8192, 8192
          %454 = vsyncadd %s447, %s453
          %s455 = smul.addr %s451, 64
          %s456 = smul.addr %s455, 128
          %s457 = scalar_lea.hbm %s5, %s456
          %s458 = sshll.u32 %s450, 4
          %s459 = int_to_ptr.vmem [resolvable:$true] %s458
          %464 = dma.hbm_to_vmem [thread:$0]  %s457, 8192, %s459, %s447, 256, 256, 16
        $region32: #{tpu_custom_call.1} parent=15 // pred_fallthru
          _
        // Predicated region
        $region33: #{tpu_custom_call.1} parent=15 // pred_check
          %p465 = pneg %p172
        $region34: #{tpu_custom_call.1} parent=15 // pred_check_branch
          %467 = sbr.rel (%p465) target = $region36
        $region35: #{tpu_custom_call.1} parent=15 // pred_region
          %s468 = sld [smem:[#allocation3 + %s40]]
          %p469 = scmp.lt.s32.totalorder %s468, 2
          %s470 = scalar_select %p469, %s468, 2
          %s471 = smul.addr %s470, 2
          %s472 = scalar_lea.vmem %s6, %s471
          %s473 = sld [smem:[#allocation3 + %s40]]
        $region36: #{tpu_custom_call.1} parent=15 // pred_fallthru
          _
        // Predicated region
        $region37: #{tpu_custom_call.1} parent=15 // pred_check
          %p474 = pneg %p200
        $region38: #{tpu_custom_call.1} parent=15 // pred_check_branch
          %476 = sbr.rel (%p474) target = $region40
        $region39: #{tpu_custom_call.1} parent=15 // pred_region
          %s477 = sand.u32 %s40, 1
          %s478 = scalar_lea.sflag [#allocation12], %s477
          %s479 = sand.u32 %s190, 1
          %s480 = smul.addr %s479, 512
          %s481 = scalar_lea.vmem [#allocation11], %s480
          %s482 = sld [smem:[#allocation3 + %s40]]
          %s484 = ssub.s32 8192, 8192
          %485 = vsyncadd %s478, %s484
          %s486 = smul.addr %s482, 64
          %s487 = smul.addr %s486, 128
          %s488 = scalar_lea.hbm %s7, %s487
          %s489 = sshll.u32 %s481, 4
          %s490 = int_to_ptr.vmem [resolvable:$true] %s489
          %495 = dma.hbm_to_vmem [thread:$0]  %s488, 8192, %s490, %s478, 256, 256, 16
        $region40: #{tpu_custom_call.1} parent=15 // pred_fallthru
          _
        // Predicated region
        $region41: #{tpu_custom_call.1} parent=15 // pred_check
          %p496 = pneg %p228
        $region42: #{tpu_custom_call.1} parent=15 // pred_check_branch
          %498 = sbr.rel (%p496) target = $region44
        $region43: #{tpu_custom_call.1} parent=15 // pred_region
          %s499 = sld [smem:[#allocation3 + %s40]]
          %p500 = scmp.lt.s32.totalorder %s499, 2
          %s501 = scalar_select %p500, %s499, 2
          %s502 = smul.addr %s501, 2
          %s503 = scalar_lea.vmem %s8, %s502
          %s504 = sld [smem:[#allocation3 + %s40]]
        $region44: #{tpu_custom_call.1} parent=15 // pred_fallthru
          _
        // Predicated region
        $region45: #{tpu_custom_call.1} parent=15 // pred_check
          %p505 = pneg %p256
        $region46: #{tpu_custom_call.1} parent=15 // pred_check_branch
          %507 = sbr.rel (%p505) target = $region48
        $region47: #{tpu_custom_call.1} parent=15 // pred_region
          %s508 = sand.u32 %s40, 1
          %s509 = scalar_lea.sflag [#allocation12], %s508
          %s510 = sand.u32 %s246, 1
          %s511 = smul.addr %s510, 512
          %s512 = scalar_lea.vmem [#allocation13], %s511
          %s513 = sld [smem:[#allocation3 + %s40]]
          %s515 = ssub.s32 8192, 8192
          %516 = vsyncadd %s509, %s515
          %s517 = smul.addr %s513, 64
          %s518 = smul.addr %s517, 128
          %s519 = scalar_lea.hbm %s9, %s518
          %s520 = sshll.u32 %s512, 4
          %s521 = int_to_ptr.vmem [resolvable:$true] %s520
          %526 = dma.hbm_to_vmem [thread:$0]  %s519, 8192, %s521, %s509, 256, 256, 16
        $region48: #{tpu_custom_call.1} parent=15 // pred_fallthru
          _
        // Predicated region
        $region49: #{tpu_custom_call.1} parent=15 // pred_check
          %p527 = pneg %p284
        $region50: #{tpu_custom_call.1} parent=15 // pred_check_branch
          %529 = sbr.rel (%p527) target = $region52
        $region51: #{tpu_custom_call.1} parent=15 // pred_region
          %s530 = sld [smem:[#allocation3 + %s40]]
          %p531 = scmp.lt.s32.totalorder %s530, 2
          %s532 = scalar_select %p531, %s530, 2
          %s533 = smul.addr %s532, 2
          %s534 = scalar_lea.vmem %s10, %s533
          %s535 = sld [smem:[#allocation3 + %s40]]
        $region52: #{tpu_custom_call.1} parent=15 // pred_fallthru
          _
        // Predicated region
        $region53: #{tpu_custom_call.1} parent=15 // pred_check
          %p536 = pneg %p312
        $region54: #{tpu_custom_call.1} parent=15 // pred_check_branch
          %538 = sbr.rel (%p536) target = $region56
        $region55: #{tpu_custom_call.1} parent=15 // pred_region
          %s539 = sand.u32 %s302, 1
          %s540 = scalar_lea.sflag [#allocation15], %s539
          %s541 = sand.u32 %s302, 1
          %s542 = smul.addr %s541, 256
          %s543 = scalar_lea.vmem [#allocation14], %s542
          %s544 = sld [smem:[#allocation3 + %s40]]
          %s546 = ssub.s32 4096, 4096
          %547 = vsyncadd %s540, %s546
          %s548 = smul.addr %s544, 32
          %s549 = smul.addr %s548, 128
          %s550 = scalar_lea.hbm %s11, %s549
          %s551 = sshll.u32 %s543, 4
          %s552 = int_to_ptr.vmem [resolvable:$true] %s551
          %557 = dma.hbm_to_vmem [thread:$0]  %s550, 4096, %s552, %s540, 128, 128, 8
        $region56: #{tpu_custom_call.1} parent=15 // pred_fallthru
          _
        // Predicated region
        $region57: #{tpu_custom_call.1} parent=15 // pred_check
          %p558 = pneg %p340
        $region58: #{tpu_custom_call.1} parent=15 // pred_check_branch
          %560 = sbr.rel (%p558) target = $region60
        $region59: #{tpu_custom_call.1} parent=15 // pred_region
          %s561 = sld [smem:[#allocation3 + %s40]]
          %p562 = scmp.lt.s32.totalorder %s561, 2
          %s563 = scalar_select %p562, %s561, 2
          %s564 = scalar_lea.vmem %s12, %s563
          %s565 = sld [smem:[#allocation3 + %s40]]
        $region60: #{tpu_custom_call.1} parent=15 // pred_fallthru
          _
      $region16: #{tpu_custom_call.1} parent=5 // pred_fallthru
        _
      %p566 = scmp.le.s32.totalorder 1, %s40
      %p567 = scmp.lt.s32.totalorder %s40, 5
      %p568 = pnand %p566, %p567
      %p569 = pneg %p568
      // Predicated region
      $region61: #{tpu_custom_call.1} parent=5 // pred_check
        _
      $region62: #{tpu_custom_call.1} parent=5 // pred_check_branch
        %571 = sbr.rel (%p568) target = $region64
      $region63: #{tpu_custom_call.1} parent=5 // pred_region
        %s572 = ssub.s32 %s40, 1
        %s573 = sand.u32 %s53, 1
        %s574 = scalar_lea.sflag [#allocation6], %s573
        %s575 = sand.u32 %s53, 1
        %s576 = smul.addr %s575, 16
        %s577 = scalar_lea.vmem [#allocation5], %s576
        // Predicated region
        $region65: #{tpu_custom_call.1} parent=63 // pred_check
          %p578 = pneg %p66
        $region66: #{tpu_custom_call.1} parent=63 // pred_check_branch
          %580 = sbr.rel (%p578) target = $region68
        $region67: #{tpu_custom_call.1} parent=63 // pred_region
          %581 = dma.done %s574, 256
        $region68: #{tpu_custom_call.1} parent=63 // pred_fallthru
          _
        %s582 = sand.u32 %s45, 1
        %s583 = scalar_lea.sflag [#allocation9], %s582
        %s584 = sand.u32 %s81, 1
        %s585 = smul.addr %s584, 128
        %s586 = scalar_lea.vmem [#allocation8], %s585
        // Predicated region
        $region69: #{tpu_custom_call.1} parent=63 // pred_check
          %p587 = pneg %p94
        $region70: #{tpu_custom_call.1} parent=63 // pred_check_branch
          %589 = sbr.rel (%p587) target = $region72
        $region71: #{tpu_custom_call.1} parent=63 // pred_region
          %590 = dma.done %s583, 2048
        $region72: #{tpu_custom_call.1} parent=63 // pred_fallthru
          _
        %s591 = sand.u32 %s45, 1
        %s592 = scalar_lea.sflag [#allocation9], %s591
        %s593 = sand.u32 %s137, 1
        %s594 = smul.addr %s593, 512
        %s595 = scalar_lea.vmem [#allocation10], %s594
        // Predicated region
        $region73: #{tpu_custom_call.1} parent=63 // pred_check
          %p596 = pneg %p150
        $region74: #{tpu_custom_call.1} parent=63 // pred_check_branch
          %598 = sbr.rel (%p596) target = $region76
        $region75: #{tpu_custom_call.1} parent=63 // pred_region
          %599 = dma.done %s592, 8192
        $region76: #{tpu_custom_call.1} parent=63 // pred_fallthru
          _
        %s600 = sand.u32 %s45, 1
        %s601 = scalar_lea.sflag [#allocation12], %s600
        %s602 = sand.u32 %s193, 1
        %s603 = smul.addr %s602, 512
        %s604 = scalar_lea.vmem [#allocation11], %s603
        // Predicated region
        $region77: #{tpu_custom_call.1} parent=63 // pred_check
          %p605 = pneg %p206
        $region78: #{tpu_custom_call.1} parent=63 // pred_check_branch
          %607 = sbr.rel (%p605) target = $region80
        $region79: #{tpu_custom_call.1} parent=63 // pred_region
          %608 = dma.done %s601, 8192
        $region80: #{tpu_custom_call.1} parent=63 // pred_fallthru
          _
        %s609 = sand.u32 %s45, 1
        %s610 = scalar_lea.sflag [#allocation12], %s609
        %s611 = sand.u32 %s249, 1
        %s612 = smul.addr %s611, 512
        %s613 = scalar_lea.vmem [#allocation13], %s612
        // Predicated region
        $region81: #{tpu_custom_call.1} parent=63 // pred_check
          %p614 = pneg %p262
        $region82: #{tpu_custom_call.1} parent=63 // pred_check_branch
          %616 = sbr.rel (%p614) target = $region84
        $region83: #{tpu_custom_call.1} parent=63 // pred_region
          %617 = dma.done %s610, 8192
        $region84: #{tpu_custom_call.1} parent=63 // pred_fallthru
          _
        %s618 = sand.u32 %s305, 1
        %s619 = scalar_lea.sflag [#allocation15], %s618
        %s620 = sand.u32 %s305, 1
        %s621 = smul.addr %s620, 256
        %s622 = scalar_lea.vmem [#allocation14], %s621
        // Predicated region
        $region85: #{tpu_custom_call.1} parent=63 // pred_check
          %p623 = pneg %p318
        $region86: #{tpu_custom_call.1} parent=63 // pred_check_branch
          %625 = sbr.rel (%p623) target = $region88
        $region87: #{tpu_custom_call.1} parent=63 // pred_region
          %626 = dma.done %s619, 4096
        $region88: #{tpu_custom_call.1} parent=63 // pred_fallthru
          _
        %s627 = sand.u32 %s53, 1
        %s628 = scalar_lea.sflag [#allocation6], %s627
        %s629 = sand.u32 %s53, 1
        %s630 = smul.addr %s629, 16
        %s631 = scalar_lea.vmem [#allocation5], %s630
        %p632 = pneg %p66
        %p633 = pneg %p63
        %s634 = sand.u32 %s45, 1
        %s635 = scalar_lea.sflag [#allocation9], %s634
        %s636 = sand.u32 %s81, 1
        %s637 = smul.addr %s636, 128
        %s638 = scalar_lea.vmem [#allocation8], %s637
        %p639 = pneg %p94
        %p640 = pneg %p91
        %s641 = sld [smem:[#allocation3 + %s45]]
        %p642 = scmp.lt.s32.totalorder %s641, 2
        %s643 = scalar_select %p642, %s641, 2
        %s644 = smul.addr %s643, 2
        %s645 = scalar_lea.vmem %s4, %s644
        %p646 = pneg %p122
        %p647 = pneg %p119
        %s648 = sand.u32 %s45, 1
        %s649 = scalar_lea.sflag [#allocation9], %s648
        %s650 = sand.u32 %s137, 1
        %s651 = smul.addr %s650, 512
        %s652 = scalar_lea.vmem [#allocation10], %s651
        %p653 = pneg %p150
        %p654 = pneg %p147
        %s655 = sld [smem:[#allocation3 + %s45]]
        %p656 = scmp.lt.s32.totalorder %s655, 2
        %s657 = scalar_select %p656, %s655, 2
        %s658 = smul.addr %s657, 2
        %s659 = scalar_lea.vmem %s6, %s658
        %p660 = pneg %p178
        %p661 = pneg %p175
        %s662 = sand.u32 %s45, 1
        %s663 = scalar_lea.sflag [#allocation12], %s662
        %s664 = sand.u32 %s193, 1
        %s665 = smul.addr %s664, 512
        %s666 = scalar_lea.vmem [#allocation11], %s665
        %p667 = pneg %p206
        %p668 = pneg %p203
        %s669 = sld [smem:[#allocation3 + %s45]]
        %p670 = scmp.lt.s32.totalorder %s669, 2
        %s671 = scalar_select %p670, %s669, 2
        %s672 = smul.addr %s671, 2
        %s673 = scalar_lea.vmem %s8, %s672
        %p674 = pneg %p234
        %p675 = pneg %p231
        %s676 = sand.u32 %s45, 1
        %s677 = scalar_lea.sflag [#allocation12], %s676
        %s678 = sand.u32 %s249, 1
        %s679 = smul.addr %s678, 512
        %s680 = scalar_lea.vmem [#allocation13], %s679
        %p681 = pneg %p262
        %p682 = pneg %p259
        %s683 = sld [smem:[#allocation3 + %s45]]
        %p684 = scmp.lt.s32.totalorder %s683, 2
        %s685 = scalar_select %p684, %s683, 2
        %s686 = smul.addr %s685, 2
        %s687 = scalar_lea.vmem %s10, %s686
        %p688 = pneg %p290
        %p689 = pneg %p287
        %s690 = sand.u32 %s305, 1
        %s691 = scalar_lea.sflag [#allocation15], %s690
        %s692 = sand.u32 %s305, 1
        %s693 = smul.addr %s692, 256
        %s694 = scalar_lea.vmem [#allocation14], %s693
        %p695 = pneg %p318
        %p696 = pneg %p315
        %s697 = sld [smem:[#allocation3 + %s45]]
        %p698 = scmp.lt.s32.totalorder %s697, 2
        %s699 = scalar_select %p698, %s697, 2
        %s700 = scalar_lea.vmem %s12, %s699
        %p701 = pneg %p346
        %p702 = pneg %p343
        %p703 = pneg %p372
        %p704 = pneg %p369
        %s705 = sand.u32 %s359, 1
        %s706 = scalar_lea.sflag [#allocation7], %s705
        %s707 = sand.u32 %s359, 1
        %s708 = smul.addr %s707, 16
        %s709 = scalar_lea.vmem [#allocation16], %s708
        %s710 = smul.u32 2, %s45
        %s711 = sld [smem:[#allocation3 + %s45]]
        %s712 = sld [smem:[#allocation3 + %s45]]
        %p713 = scmp.lt.s32.totalorder %s712, 2
        %s714 = scalar_select %p713, %s712, 2
        %s715 = smul.addr %s714, 2
        %s716 = scalar_lea.vmem %s4, %s715
        %s717 = sld [smem:[#allocation3 + %s45]]
        %s718 = sld [smem:[#allocation3 + %s45]]
        %s719 = sld [smem:[#allocation3 + %s45]]
        %p720 = scmp.lt.s32.totalorder %s719, 2
        %s721 = scalar_select %p720, %s719, 2
        %s722 = smul.addr %s721, 2
        %s723 = scalar_lea.vmem %s6, %s722
        %s724 = sld [smem:[#allocation3 + %s45]]
        %s725 = sld [smem:[#allocation3 + %s45]]
        %s726 = sld [smem:[#allocation3 + %s45]]
        %p727 = scmp.lt.s32.totalorder %s726, 2
        %s728 = scalar_select %p727, %s726, 2
        %s729 = smul.addr %s728, 2
        %s730 = scalar_lea.vmem %s8, %s729
        %s731 = sld [smem:[#allocation3 + %s45]]
        %s732 = sld [smem:[#allocation3 + %s45]]
        %s733 = sld [smem:[#allocation3 + %s45]]
        %p734 = scmp.lt.s32.totalorder %s733, 2
        %s735 = scalar_select %p734, %s733, 2
        %s736 = smul.addr %s735, 2
        %s737 = scalar_lea.vmem %s10, %s736
        %s738 = sld [smem:[#allocation3 + %s45]]
        %s739 = sld [smem:[#allocation3 + %s45]]
        %s740 = sld [smem:[#allocation3 + %s45]]
        %p741 = scmp.lt.s32.totalorder %s740, 2
        %s742 = scalar_select %p741, %s740, 2
        %s743 = scalar_lea.vmem %s12, %s742
        %s744 = sld [smem:[#allocation3 + %s45]]
        %s745 = smul.u32 2, %s45
        %s746 = sld [smem:[#allocation4 + %s45]]
        %p747 = scmp.eq.s32.totalorder %s746, 0
        // Predicated region
        $region89: #{tpu_custom_call.1} parent=63 // pred_check
          %p748 = pneg %p747
        $region90: #{tpu_custom_call.1} parent=63 // pred_check_branch
          %750 = sbr.rel (%p748) target = $region92
        $region91: #{tpu_custom_call.1} parent=63 // pred_region
          %751 = vst [vmem:[%s709] sm:$0xff] 0.0
          %752 = vst [vmem:[%s709 + $0x8] sm:$0xff] 0.0
        $region92: #{tpu_custom_call.1} parent=63 // pred_fallthru
          _
        %s753 = sld [smem:[#allocation4 + %s45]]
        %p754 = scmp.ne.s32.totalorder %s753, 0
        // Predicated region
        $region93: #{tpu_custom_call.1} parent=63 // pred_check
          %p755 = pneg %p754
        $region94: #{tpu_custom_call.1} parent=63 // pred_check_branch
          %757 = sbr.rel (%p755) target = $region96
        $region95: #{tpu_custom_call.1} parent=63 // pred_region
          %v758 = vld [vmem:[%s577] sm:$0xff]
          %v759 = vld [vmem:[%s577 + $0x8] sm:$0xff]
          %v760 = vld [vmem:[%s586] sm:$0xff]
          %v761 = vld [vmem:[%s586 + $0x8] sm:$0xff]
          %v762 = vld [vmem:[%s586 + $0x10] sm:$0xff]
          %v763 = vld [vmem:[%s586 + $0x18] sm:$0xff]
          %v764 = vld [vmem:[%s586 + $0x20] sm:$0xff]
          %v765 = vld [vmem:[%s586 + $0x28] sm:$0xff]
          %v766 = vld [vmem:[%s586 + $0x30] sm:$0xff]
          %v767 = vld [vmem:[%s586 + $0x38] sm:$0xff]
          %v768 = vld [vmem:[%s586 + $0x40] sm:$0xff]
          %v769 = vld [vmem:[%s586 + $0x48] sm:$0xff]
          %v770 = vld [vmem:[%s586 + $0x50] sm:$0xff]
          %v771 = vld [vmem:[%s586 + $0x58] sm:$0xff]
          %v772 = vld [vmem:[%s586 + $0x60] sm:$0xff]
          %v773 = vld [vmem:[%s586 + $0x68] sm:$0xff]
          %v774 = vld [vmem:[%s586 + $0x70] sm:$0xff]
          %v775 = vld [vmem:[%s586 + $0x78] sm:$0xff]
          %v776 = vld [vmem:[%s716] sm:$0x3]
          %v778 = vlaneseq
          %v779 = vshrl.u32 %v778, 7
          %v780 = vsub.s32 0, %v779
          %v781 = vrot.slane %v776, %v780
          %v782 = vlaneseq
          %v783 = vshrl.u32 %v782, 7
          %v784 = vsub.s32 1, %v783
          %v785 = vrot.slane %v776, %v784
          %vm788 = vcmask 523264
          %v790 = vsel %vm788, %v758, 0
          %v793 = vsel %vm788, %v759, 0
          %795 = vmatprep.subr.mxu0 %v761
          %796 = vmatpush1.msra.mxu0 %v760
          %797 = vmatprep.subr.mxu0 %v763
          %798 = vmatpush1.msra.mxu0 %v762
          %799 = vmatprep.subr.mxu0 %v765
          %800 = vmatpush1.msra.mxu0 %v764
          %801 = vmatprep.subr.mxu0 %v767
          %802 = vmatpush1.msra.mxu0 %v766
          %803 = vmatprep.subr.mxu0 %v769
          %804 = vmatpush1.msra.mxu0 %v768
          %805 = vmatprep.subr.mxu0 %v771
          %806 = vmatpush1.msra.mxu0 %v770
          %807 = vmatprep.subr.mxu0 %v773
          %808 = vmatpush1.msra.mxu0 %v772
          %809 = vmatprep.subr.mxu0 %v775
          %810 = vmatpush1.msra.mxu0 %v774
          %811 = vmatprep.subr.mxu0 0.0
          %812 = vmatpush1.msra.mxu0 0.0
          %813 = vmatprep.subr.mxu0 0.0
          %814 = vmatpush1.msra.mxu0 0.0
          %815 = vmatprep.subr.mxu0 0.0
          %816 = vmatpush1.msra.mxu0 0.0
          %817 = vmatprep.subr.mxu0 0.0
          %818 = vmatpush1.msra.mxu0 0.0
          %819 = vmatprep.subr.mxu0 0.0
          %820 = vmatpush1.msra.mxu0 0.0
          %821 = vmatprep.subr.mxu0 0.0
          %822 = vmatpush1.msra.mxu0 0.0
          %823 = vmatprep.subr.mxu0 0.0
          %824 = vmatpush1.msra.mxu0 0.0
          %825 = vmatprep.subr.mxu0 0.0
          %826 = vmatpush1.msra.mxu0 0.0
          %827 = vmatprep.subr.mxu0 0.0
          %828 = vmatpush1.msra.mxu0 0.0
          %829 = vmatprep.subr.mxu0 0.0
          %830 = vmatpush1.msra.mxu0 0.0
          %831 = vmatprep.subr.mxu0 0.0
          %832 = vmatpush1.msra.mxu0 0.0
          %833 = vmatprep.subr.mxu0 0.0
          %834 = vmatpush1.msra.mxu0 0.0
          %835 = vmatprep.subr.mxu0 0.0
          %836 = vmatpush1.msra.mxu0 0.0
          %837 = vmatprep.subr.mxu0 0.0
          %838 = vmatpush1.msra.mxu0 0.0
          %839 = vmatprep.subr.mxu0 0.0
          %840 = vmatpush1.msra.mxu0 0.0
          %841 = vmatprep.subr.mxu0 0.0
          %842 = vmatpush1.msra.mxu0 0.0
          %843 = vmatprep.subr.mxu0 0.0
          %844 = vmatpush1.msra.mxu0 0.0
          %845 = vmatprep.subr.mxu0 0.0
          %846 = vmatpush1.msra.mxu0 0.0
          %847 = vmatprep.subr.mxu0 0.0
          %848 = vmatpush1.msra.mxu0 0.0
          %849 = vmatprep.subr.mxu0 0.0
          %850 = vmatpush1.msra.mxu0 0.0
          %851 = vmatprep.subr.mxu0 0.0
          %852 = vmatpush1.msra.mxu0 0.0
          %853 = vmatprep.subr.mxu0 0.0
          %854 = vmatpush1.msra.mxu0 0.0
          %855 = vmatprep.subr.mxu0 0.0
          %856 = vmatpush1.msra.mxu0 0.0
          %857 = vmatprep.subr.mxu0 0.0
          %858 = vmatpush1.msra.mxu0 0.0
          %859 = vmatprep.mubr.f32.mxu0 0.0
          %860 = vmatmul.mubr.f32.gmra.mrb[0].mxu0 %v790
          %v861 = vpop.f32.mrb[0].mxu0
          %v862 = vadd.f32 %v781, %v861
          %v863 = vpop.f32.mrb[0].mxu0
          %v864 = vadd.f32 %v785, %v863
          %865 = vmatprep.mubr.f32.mxu0 0.0
          %866 = vmatmul.mubr.f32.gmra.mrb[0].mxu0 %v793
          %v867 = vpop.f32.mrb[0].mxu0
          %v868 = vadd.f32 %v781, %v867
          %v869 = vpop.f32.mrb[0].mxu0
          %v870 = vadd.f32 %v785, %v869
          %871 = vdwg.mxu0
          %v872 = vtanh.pop %v862
          %v873 = vtanh.pop %v864
          %v874 = vtanh.pop %v868
          %v875 = vtanh.pop %v870
          %v876 = vld [vmem:[%s595] sm:$0xff]
          %v877 = vld [vmem:[%s595 + $0x8] sm:$0xff]
          %v878 = vld [vmem:[%s595 + $0x10] sm:$0xff]
          %v879 = vld [vmem:[%s595 + $0x18] sm:$0xff]
          %v880 = vld [vmem:[%s595 + $0x20] sm:$0xff]
          %v881 = vld [vmem:[%s595 + $0x28] sm:$0xff]
          %v882 = vld [vmem:[%s595 + $0x30] sm:$0xff]
          %v883 = vld [vmem:[%s595 + $0x38] sm:$0xff]
          %v884 = vld [vmem:[%s595 + $0x40] sm:$0xff]
          %v885 = vld [vmem:[%s595 + $0x48] sm:$0xff]
          %v886 = vld [vmem:[%s595 + $0x50] sm:$0xff]
          %v887 = vld [vmem:[%s595 + $0x58] sm:$0xff]
          %v888 = vld [vmem:[%s595 + $0x60] sm:$0xff]
          %v889 = vld [vmem:[%s595 + $0x68] sm:$0xff]
          %v890 = vld [vmem:[%s595 + $0x70] sm:$0xff]
          %v891 = vld [vmem:[%s595 + $0x78] sm:$0xff]
          %v892 = vld [vmem:[%s595 + $0x80] sm:$0xff]
          %v893 = vld [vmem:[%s595 + $0x88] sm:$0xff]
          %v894 = vld [vmem:[%s595 + $0x90] sm:$0xff]
          %v895 = vld [vmem:[%s595 + $0x98] sm:$0xff]
          %v896 = vld [vmem:[%s595 + $0xa0] sm:$0xff]
          %v897 = vld [vmem:[%s595 + $0xa8] sm:$0xff]
          %v898 = vld [vmem:[%s595 + $0xb0] sm:$0xff]
          %v899 = vld [vmem:[%s595 + $0xb8] sm:$0xff]
          %v900 = vld [vmem:[%s595 + $0xc0] sm:$0xff]
          %v901 = vld [vmem:[%s595 + $0xc8] sm:$0xff]
          %v902 = vld [vmem:[%s595 + $0xd0] sm:$0xff]
          %v903 = vld [vmem:[%s595 + $0xd8] sm:$0xff]
          %v904 = vld [vmem:[%s595 + $0xe0] sm:$0xff]
          %v905 = vld [vmem:[%s595 + $0xe8] sm:$0xff]
          %v906 = vld [vmem:[%s595 + $0xf0] sm:$0xff]
          %v907 = vld [vmem:[%s595 + $0xf8] sm:$0xff]
          %v908 = vld [vmem:[%s595 + $0x100] sm:$0xff]
          %v909 = vld [vmem:[%s595 + $0x108] sm:$0xff]
          %v910 = vld [vmem:[%s595 + $0x110] sm:$0xff]
          %v911 = vld [vmem:[%s595 + $0x118] sm:$0xff]
          %v912 = vld [vmem:[%s595 + $0x120] sm:$0xff]
          %v913 = vld [vmem:[%s595 + $0x128] sm:$0xff]
          %v914 = vld [vmem:[%s595 + $0x130] sm:$0xff]
          %v915 = vld [vmem:[%s595 + $0x138] sm:$0xff]
          %v916 = vld [vmem:[%s595 + $0x140] sm:$0xff]
          %v917 = vld [vmem:[%s595 + $0x148] sm:$0xff]
          %v918 = vld [vmem:[%s595 + $0x150] sm:$0xff]
          %v919 = vld [vmem:[%s595 + $0x158] sm:$0xff]
          %v920 = vld [vmem:[%s595 + $0x160] sm:$0xff]
          %v921 = vld [vmem:[%s595 + $0x168] sm:$0xff]
          %v922 = vld [vmem:[%s595 + $0x170] sm:$0xff]
          %v923 = vld [vmem:[%s595 + $0x178] sm:$0xff]
          %v924 = vld [vmem:[%s595 + $0x180] sm:$0xff]
          %v925 = vld [vmem:[%s595 + $0x188] sm:$0xff]
          %v926 = vld [vmem:[%s595 + $0x190] sm:$0xff]
          %v927 = vld [vmem:[%s595 + $0x198] sm:$0xff]
          %v928 = vld [vmem:[%s595 + $0x1a0] sm:$0xff]
          %v929 = vld [vmem:[%s595 + $0x1a8] sm:$0xff]
          %v930 = vld [vmem:[%s595 + $0x1b0] sm:$0xff]
          %v931 = vld [vmem:[%s595 + $0x1b8] sm:$0xff]
          %v932 = vld [vmem:[%s595 + $0x1c0] sm:$0xff]
          %v933 = vld [vmem:[%s595 + $0x1c8] sm:$0xff]
          %v934 = vld [vmem:[%s595 + $0x1d0] sm:$0xff]
          %v935 = vld [vmem:[%s595 + $0x1d8] sm:$0xff]
          %v936 = vld [vmem:[%s595 + $0x1e0] sm:$0xff]
          %v937 = vld [vmem:[%s595 + $0x1e8] sm:$0xff]
          %v938 = vld [vmem:[%s595 + $0x1f0] sm:$0xff]
          %v939 = vld [vmem:[%s595 + $0x1f8] sm:$0xff]
          %v940 = vld [vmem:[%s723] sm:$0x3]
          %v942 = vlaneseq
          %v943 = vshrl.u32 %v942, 7
          %v944 = vsub.s32 0, %v943
          %v945 = vrot.slane %v940, %v944
          %v946 = vlaneseq
          %v947 = vshrl.u32 %v946, 7
          %v948 = vsub.s32 1, %v947
          %v949 = vrot.slane %v940, %v948
          %952 = vmatprep.subr.mxu0 %v877
          %953 = vmatpush1.msra.mxu0 %v876
          %954 = vmatprep.subr.mxu0 %v879
          %955 = vmatpush1.msra.mxu0 %v878
          %956 = vmatprep.subr.mxu0 %v881
          %957 = vmatpush1.msra.mxu0 %v880
          %958 = vmatprep.subr.mxu0 %v883
          %959 = vmatpush1.msra.mxu0 %v882
          %960 = vmatprep.subr.mxu0 %v885
          %961 = vmatpush1.msra.mxu0 %v884
          %962 = vmatprep.subr.mxu0 %v887
          %963 = vmatpush1.msra.mxu0 %v886
          %964 = vmatprep.subr.mxu0 %v889
          %965 = vmatpush1.msra.mxu0 %v888
          %966 = vmatprep.subr.mxu0 %v891
          %967 = vmatpush1.msra.mxu0 %v890
          %968 = vmatprep.subr.mxu0 %v893
          %969 = vmatpush1.msra.mxu0 %v892
          %970 = vmatprep.subr.mxu0 %v895
          %971 = vmatpush1.msra.mxu0 %v894
          %972 = vmatprep.subr.mxu0 %v897
          %973 = vmatpush1.msra.mxu0 %v896
          %974 = vmatprep.subr.mxu0 %v899
          %975 = vmatpush1.msra.mxu0 %v898
          %976 = vmatprep.subr.mxu0 %v901
          %977 = vmatpush1.msra.mxu0 %v900
          %978 = vmatprep.subr.mxu0 %v903
          %979 = vmatpush1.msra.mxu0 %v902
          %980 = vmatprep.subr.mxu0 %v905
          %981 = vmatpush1.msra.mxu0 %v904
          %982 = vmatprep.subr.mxu0 %v907
          %983 = vmatpush1.msra.mxu0 %v906
          %984 = vmatprep.subr.mxu0 %v909
          %985 = vmatpush1.msra.mxu0 %v908
          %986 = vmatprep.subr.mxu0 %v911
          %987 = vmatpush1.msra.mxu0 %v910
          %988 = vmatprep.subr.mxu0 %v913
          %989 = vmatpush1.msra.mxu0 %v912
          %990 = vmatprep.subr.mxu0 %v915
          %991 = vmatpush1.msra.mxu0 %v914
          %992 = vmatprep.subr.mxu0 %v917
          %993 = vmatpush1.msra.mxu0 %v916
          %994 = vmatprep.subr.mxu0 %v919
          %995 = vmatpush1.msra.mxu0 %v918
          %996 = vmatprep.subr.mxu0 %v921
          %997 = vmatpush1.msra.mxu0 %v920
          %998 = vmatprep.subr.mxu0 %v923
          %999 = vmatpush1.msra.mxu0 %v922
          %1000 = vmatprep.subr.mxu0 %v925
          %1001 = vmatpush1.msra.mxu0 %v924
          %1002 = vmatprep.subr.mxu0 %v927
          %1003 = vmatpush1.msra.mxu0 %v926
          %1004 = vmatprep.subr.mxu0 %v929
          %1005 = vmatpush1.msra.mxu0 %v928
          %1006 = vmatprep.subr.mxu0 %v931
          %1007 = vmatpush1.msra.mxu0 %v930
          %1008 = vmatprep.subr.mxu0 %v933
          %1009 = vmatpush1.msra.mxu0 %v932
          %1010 = vmatprep.subr.mxu0 %v935
          %1011 = vmatpush1.msra.mxu0 %v934
          %1012 = vmatprep.subr.mxu0 %v937
          %1013 = vmatpush1.msra.mxu0 %v936
          %1014 = vmatprep.subr.mxu0 %v939
          %1015 = vmatpush1.msra.mxu0 %v938
          %1016 = vmatprep.mubr.f32.mxu0 %v873
          %1017 = vmatmul.mubr.f32.gmra.mrb[0].mxu0 %v872
          %v1018 = vpop.f32.mrb[0].mxu0
          %v1019 = vadd.f32 %v945, %v1018
          %v1020 = vpop.f32.mrb[0].mxu0
          %v1021 = vadd.f32 %v949, %v1020
          %1022 = vmatprep.mubr.f32.mxu0 %v875
          %1023 = vmatmul.mubr.f32.gmra.mrb[0].mxu0 %v874
          %v1024 = vpop.f32.mrb[0].mxu0
          %v1025 = vadd.f32 %v945, %v1024
          %v1026 = vpop.f32.mrb[0].mxu0
          %v1027 = vadd.f32 %v949, %v1026
          %1028 = vdwg.mxu0
          %v1029 = vtanh.pop %v1019
          %v1030 = vtanh.pop %v1021
          %v1031 = vtanh.pop %v1025
          %v1032 = vtanh.pop %v1027
          %v1033 = vld [vmem:[%s604] sm:$0xff]
          %v1034 = vld [vmem:[%s604 + $0x8] sm:$0xff]
          %v1035 = vld [vmem:[%s604 + $0x10] sm:$0xff]
          %v1036 = vld [vmem:[%s604 + $0x18] sm:$0xff]
          %v1037 = vld [vmem:[%s604 + $0x20] sm:$0xff]
          %v1038 = vld [vmem:[%s604 + $0x28] sm:$0xff]
          %v1039 = vld [vmem:[%s604 + $0x30] sm:$0xff]
          %v1040 = vld [vmem:[%s604 + $0x38] sm:$0xff]
          %v1041 = vld [vmem:[%s604 + $0x40] sm:$0xff]
          %v1042 = vld [vmem:[%s604 + $0x48] sm:$0xff]
          %v1043 = vld [vmem:[%s604 + $0x50] sm:$0xff]
          %v1044 = vld [vmem:[%s604 + $0x58] sm:$0xff]
          %v1045 = vld [vmem:[%s604 + $0x60] sm:$0xff]
          %v1046 = vld [vmem:[%s604 + $0x68] sm:$0xff]
          %v1047 = vld [vmem:[%s604 + $0x70] sm:$0xff]
          %v1048 = vld [vmem:[%s604 + $0x78] sm:$0xff]
          %v1049 = vld [vmem:[%s604 + $0x80] sm:$0xff]
          %v1050 = vld [vmem:[%s604 + $0x88] sm:$0xff]
          %v1051 = vld [vmem:[%s604 + $0x90] sm:$0xff]
          %v1052 = vld [vmem:[%s604 + $0x98] sm:$0xff]
          %v1053 = vld [vmem:[%s604 + $0xa0] sm:$0xff]
          %v1054 = vld [vmem:[%s604 + $0xa8] sm:$0xff]
          %v1055 = vld [vmem:[%s604 + $0xb0] sm:$0xff]
          %v1056 = vld [vmem:[%s604 + $0xb8] sm:$0xff]
          %v1057 = vld [vmem:[%s604 + $0xc0] sm:$0xff]
          %v1058 = vld [vmem:[%s604 + $0xc8] sm:$0xff]
          %v1059 = vld [vmem:[%s604 + $0xd0] sm:$0xff]
          %v1060 = vld [vmem:[%s604 + $0xd8] sm:$0xff]
          %v1061 = vld [vmem:[%s604 + $0xe0] sm:$0xff]
          %v1062 = vld [vmem:[%s604 + $0xe8] sm:$0xff]
          %v1063 = vld [vmem:[%s604 + $0xf0] sm:$0xff]
          %v1064 = vld [vmem:[%s604 + $0xf8] sm:$0xff]
          %v1065 = vld [vmem:[%s604 + $0x100] sm:$0xff]
          %v1066 = vld [vmem:[%s604 + $0x108] sm:$0xff]
          %v1067 = vld [vmem:[%s604 + $0x110] sm:$0xff]
          %v1068 = vld [vmem:[%s604 + $0x118] sm:$0xff]
          %v1069 = vld [vmem:[%s604 + $0x120] sm:$0xff]
          %v1070 = vld [vmem:[%s604 + $0x128] sm:$0xff]
          %v1071 = vld [vmem:[%s604 + $0x130] sm:$0xff]
          %v1072 = vld [vmem:[%s604 + $0x138] sm:$0xff]
          %v1073 = vld [vmem:[%s604 + $0x140] sm:$0xff]
          %v1074 = vld [vmem:[%s604 + $0x148] sm:$0xff]
          %v1075 = vld [vmem:[%s604 + $0x150] sm:$0xff]
          %v1076 = vld [vmem:[%s604 + $0x158] sm:$0xff]
          %v1077 = vld [vmem:[%s604 + $0x160] sm:$0xff]
          %v1078 = vld [vmem:[%s604 + $0x168] sm:$0xff]
          %v1079 = vld [vmem:[%s604 + $0x170] sm:$0xff]
          %v1080 = vld [vmem:[%s604 + $0x178] sm:$0xff]
          %v1081 = vld [vmem:[%s604 + $0x180] sm:$0xff]
          %v1082 = vld [vmem:[%s604 + $0x188] sm:$0xff]
          %v1083 = vld [vmem:[%s604 + $0x190] sm:$0xff]
          %v1084 = vld [vmem:[%s604 + $0x198] sm:$0xff]
          %v1085 = vld [vmem:[%s604 + $0x1a0] sm:$0xff]
          %v1086 = vld [vmem:[%s604 + $0x1a8] sm:$0xff]
          %v1087 = vld [vmem:[%s604 + $0x1b0] sm:$0xff]
          %v1088 = vld [vmem:[%s604 + $0x1b8] sm:$0xff]
          %v1089 = vld [vmem:[%s604 + $0x1c0] sm:$0xff]
          %v1090 = vld [vmem:[%s604 + $0x1c8] sm:$0xff]
          %v1091 = vld [vmem:[%s604 + $0x1d0] sm:$0xff]
          %v1092 = vld [vmem:[%s604 + $0x1d8] sm:$0xff]
          %v1093 = vld [vmem:[%s604 + $0x1e0] sm:$0xff]
          %v1094 = vld [vmem:[%s604 + $0x1e8] sm:$0xff]
          %v1095 = vld [vmem:[%s604 + $0x1f0] sm:$0xff]
          %v1096 = vld [vmem:[%s604 + $0x1f8] sm:$0xff]
          %v1097 = vld [vmem:[%s730] sm:$0x3]
          %v1099 = vlaneseq
          %v1100 = vshrl.u32 %v1099, 7
          %v1101 = vsub.s32 0, %v1100
          %v1102 = vrot.slane %v1097, %v1101
          %v1103 = vlaneseq
          %v1104 = vshrl.u32 %v1103, 7
          %v1105 = vsub.s32 1, %v1104
          %v1106 = vrot.slane %v1097, %v1105
          %1109 = vmatprep.subr.mxu0 %v1034
          %1110 = vmatpush1.msra.mxu0 %v1033
          %1111 = vmatprep.subr.mxu0 %v1036
          %1112 = vmatpush1.msra.mxu0 %v1035
          %1113 = vmatprep.subr.mxu0 %v1038
          %1114 = vmatpush1.msra.mxu0 %v1037
          %1115 = vmatprep.subr.mxu0 %v1040
          %1116 = vmatpush1.msra.mxu0 %v1039
          %1117 = vmatprep.subr.mxu0 %v1042
          %1118 = vmatpush1.msra.mxu0 %v1041
          %1119 = vmatprep.subr.mxu0 %v1044
          %1120 = vmatpush1.msra.mxu0 %v1043
          %1121 = vmatprep.subr.mxu0 %v1046
          %1122 = vmatpush1.msra.mxu0 %v1045
          %1123 = vmatprep.subr.mxu0 %v1048
          %1124 = vmatpush1.msra.mxu0 %v1047
          %1125 = vmatprep.subr.mxu0 %v1050
          %1126 = vmatpush1.msra.mxu0 %v1049
          %1127 = vmatprep.subr.mxu0 %v1052
          %1128 = vmatpush1.msra.mxu0 %v1051
          %1129 = vmatprep.subr.mxu0 %v1054
          %1130 = vmatpush1.msra.mxu0 %v1053
          %1131 = vmatprep.subr.mxu0 %v1056
          %1132 = vmatpush1.msra.mxu0 %v1055
          %1133 = vmatprep.subr.mxu0 %v1058
          %1134 = vmatpush1.msra.mxu0 %v1057
          %1135 = vmatprep.subr.mxu0 %v1060
          %1136 = vmatpush1.msra.mxu0 %v1059
          %1137 = vmatprep.subr.mxu0 %v1062
          %1138 = vmatpush1.msra.mxu0 %v1061
          %1139 = vmatprep.subr.mxu0 %v1064
          %1140 = vmatpush1.msra.mxu0 %v1063
          %1141 = vmatprep.subr.mxu0 %v1066
          %1142 = vmatpush1.msra.mxu0 %v1065
          %1143 = vmatprep.subr.mxu0 %v1068
          %1144 = vmatpush1.msra.mxu0 %v1067
          %1145 = vmatprep.subr.mxu0 %v1070
          %1146 = vmatpush1.msra.mxu0 %v1069
          %1147 = vmatprep.subr.mxu0 %v1072
          %1148 = vmatpush1.msra.mxu0 %v1071
          %1149 = vmatprep.subr.mxu0 %v1074
          %1150 = vmatpush1.msra.mxu0 %v1073
          %1151 = vmatprep.subr.mxu0 %v1076
          %1152 = vmatpush1.msra.mxu0 %v1075
          %1153 = vmatprep.subr.mxu0 %v1078
          %1154 = vmatpush1.msra.mxu0 %v1077
          %1155 = vmatprep.subr.mxu0 %v1080
          %1156 = vmatpush1.msra.mxu0 %v1079
          %1157 = vmatprep.subr.mxu0 %v1082
          %1158 = vmatpush1.msra.mxu0 %v1081
          %1159 = vmatprep.subr.mxu0 %v1084
          %1160 = vmatpush1.msra.mxu0 %v1083
          %1161 = vmatprep.subr.mxu0 %v1086
          %1162 = vmatpush1.msra.mxu0 %v1085
          %1163 = vmatprep.subr.mxu0 %v1088
          %1164 = vmatpush1.msra.mxu0 %v1087
          %1165 = vmatprep.subr.mxu0 %v1090
          %1166 = vmatpush1.msra.mxu0 %v1089
          %1167 = vmatprep.subr.mxu0 %v1092
          %1168 = vmatpush1.msra.mxu0 %v1091
          %1169 = vmatprep.subr.mxu0 %v1094
          %1170 = vmatpush1.msra.mxu0 %v1093
          %1171 = vmatprep.subr.mxu0 %v1096
          %1172 = vmatpush1.msra.mxu0 %v1095
          %1173 = vmatprep.mubr.f32.mxu0 %v1030
          %1174 = vmatmul.mubr.f32.gmra.mrb[0].mxu0 %v1029
          %v1175 = vpop.f32.mrb[0].mxu0
          %v1176 = vadd.f32 %v1102, %v1175
          %v1177 = vpop.f32.mrb[0].mxu0
          %v1178 = vadd.f32 %v1106, %v1177
          %1179 = vmatprep.mubr.f32.mxu0 %v1032
          %1180 = vmatmul.mubr.f32.gmra.mrb[0].mxu0 %v1031
          %v1181 = vpop.f32.mrb[0].mxu0
          %v1182 = vadd.f32 %v1102, %v1181
          %v1183 = vpop.f32.mrb[0].mxu0
          %v1184 = vadd.f32 %v1106, %v1183
          %1185 = vdwg.mxu0
          %v1186 = vtanh.pop %v1176
          %v1187 = vtanh.pop %v1178
          %v1188 = vtanh.pop %v1182
          %v1189 = vtanh.pop %v1184
          %v1190 = vld [vmem:[%s613] sm:$0xff]
          %v1191 = vld [vmem:[%s613 + $0x8] sm:$0xff]
          %v1192 = vld [vmem:[%s613 + $0x10] sm:$0xff]
          %v1193 = vld [vmem:[%s613 + $0x18] sm:$0xff]
          %v1194 = vld [vmem:[%s613 + $0x20] sm:$0xff]
          %v1195 = vld [vmem:[%s613 + $0x28] sm:$0xff]
          %v1196 = vld [vmem:[%s613 + $0x30] sm:$0xff]
          %v1197 = vld [vmem:[%s613 + $0x38] sm:$0xff]
          %v1198 = vld [vmem:[%s613 + $0x40] sm:$0xff]
          %v1199 = vld [vmem:[%s613 + $0x48] sm:$0xff]
          %v1200 = vld [vmem:[%s613 + $0x50] sm:$0xff]
          %v1201 = vld [vmem:[%s613 + $0x58] sm:$0xff]
          %v1202 = vld [vmem:[%s613 + $0x60] sm:$0xff]
          %v1203 = vld [vmem:[%s613 + $0x68] sm:$0xff]
          %v1204 = vld [vmem:[%s613 + $0x70] sm:$0xff]
          %v1205 = vld [vmem:[%s613 + $0x78] sm:$0xff]
          %v1206 = vld [vmem:[%s613 + $0x80] sm:$0xff]
          %v1207 = vld [vmem:[%s613 + $0x88] sm:$0xff]
          %v1208 = vld [vmem:[%s613 + $0x90] sm:$0xff]
          %v1209 = vld [vmem:[%s613 + $0x98] sm:$0xff]
          %v1210 = vld [vmem:[%s613 + $0xa0] sm:$0xff]
          %v1211 = vld [vmem:[%s613 + $0xa8] sm:$0xff]
          %v1212 = vld [vmem:[%s613 + $0xb0] sm:$0xff]
          %v1213 = vld [vmem:[%s613 + $0xb8] sm:$0xff]
          %v1214 = vld [vmem:[%s613 + $0xc0] sm:$0xff]
          %v1215 = vld [vmem:[%s613 + $0xc8] sm:$0xff]
          %v1216 = vld [vmem:[%s613 + $0xd0] sm:$0xff]
          %v1217 = vld [vmem:[%s613 + $0xd8] sm:$0xff]
          %v1218 = vld [vmem:[%s613 + $0xe0] sm:$0xff]
          %v1219 = vld [vmem:[%s613 + $0xe8] sm:$0xff]
          %v1220 = vld [vmem:[%s613 + $0xf0] sm:$0xff]
          %v1221 = vld [vmem:[%s613 + $0xf8] sm:$0xff]
          %v1222 = vld [vmem:[%s613 + $0x100] sm:$0xff]
          %v1223 = vld [vmem:[%s613 + $0x108] sm:$0xff]
          %v1224 = vld [vmem:[%s613 + $0x110] sm:$0xff]
          %v1225 = vld [vmem:[%s613 + $0x118] sm:$0xff]
          %v1226 = vld [vmem:[%s613 + $0x120] sm:$0xff]
          %v1227 = vld [vmem:[%s613 + $0x128] sm:$0xff]
          %v1228 = vld [vmem:[%s613 + $0x130] sm:$0xff]
          %v1229 = vld [vmem:[%s613 + $0x138] sm:$0xff]
          %v1230 = vld [vmem:[%s613 + $0x140] sm:$0xff]
          %v1231 = vld [vmem:[%s613 + $0x148] sm:$0xff]
          %v1232 = vld [vmem:[%s613 + $0x150] sm:$0xff]
          %v1233 = vld [vmem:[%s613 + $0x158] sm:$0xff]
          %v1234 = vld [vmem:[%s613 + $0x160] sm:$0xff]
          %v1235 = vld [vmem:[%s613 + $0x168] sm:$0xff]
          %v1236 = vld [vmem:[%s613 + $0x170] sm:$0xff]
          %v1237 = vld [vmem:[%s613 + $0x178] sm:$0xff]
          %v1238 = vld [vmem:[%s613 + $0x180] sm:$0xff]
          %v1239 = vld [vmem:[%s613 + $0x188] sm:$0xff]
          %v1240 = vld [vmem:[%s613 + $0x190] sm:$0xff]
          %v1241 = vld [vmem:[%s613 + $0x198] sm:$0xff]
          %v1242 = vld [vmem:[%s613 + $0x1a0] sm:$0xff]
          %v1243 = vld [vmem:[%s613 + $0x1a8] sm:$0xff]
          %v1244 = vld [vmem:[%s613 + $0x1b0] sm:$0xff]
          %v1245 = vld [vmem:[%s613 + $0x1b8] sm:$0xff]
          %v1246 = vld [vmem:[%s613 + $0x1c0] sm:$0xff]
          %v1247 = vld [vmem:[%s613 + $0x1c8] sm:$0xff]
          %v1248 = vld [vmem:[%s613 + $0x1d0] sm:$0xff]
          %v1249 = vld [vmem:[%s613 + $0x1d8] sm:$0xff]
          %v1250 = vld [vmem:[%s613 + $0x1e0] sm:$0xff]
          %v1251 = vld [vmem:[%s613 + $0x1e8] sm:$0xff]
          %v1252 = vld [vmem:[%s613 + $0x1f0] sm:$0xff]
          %v1253 = vld [vmem:[%s613 + $0x1f8] sm:$0xff]
          %v1254 = vld [vmem:[%s737] sm:$0x3]
          %v1256 = vlaneseq
          %v1257 = vshrl.u32 %v1256, 7
          %v1258 = vsub.s32 0, %v1257
          %v1259 = vrot.slane %v1254, %v1258
          %v1260 = vlaneseq
          %v1261 = vshrl.u32 %v1260, 7
          %v1262 = vsub.s32 1, %v1261
          %v1263 = vrot.slane %v1254, %v1262
          %1266 = vmatprep.subr.mxu0 %v1191
          %1267 = vmatpush1.msra.mxu0 %v1190
          %1268 = vmatprep.subr.mxu0 %v1193
          %1269 = vmatpush1.msra.mxu0 %v1192
          %1270 = vmatprep.subr.mxu0 %v1195
          %1271 = vmatpush1.msra.mxu0 %v1194
          %1272 = vmatprep.subr.mxu0 %v1197
          %1273 = vmatpush1.msra.mxu0 %v1196
          %1274 = vmatprep.subr.mxu0 %v1199
          %1275 = vmatpush1.msra.mxu0 %v1198
          %1276 = vmatprep.subr.mxu0 %v1201
          %1277 = vmatpush1.msra.mxu0 %v1200
          %1278 = vmatprep.subr.mxu0 %v1203
          %1279 = vmatpush1.msra.mxu0 %v1202
          %1280 = vmatprep.subr.mxu0 %v1205
          %1281 = vmatpush1.msra.mxu0 %v1204
          %1282 = vmatprep.subr.mxu0 %v1207
          %1283 = vmatpush1.msra.mxu0 %v1206
          %1284 = vmatprep.subr.mxu0 %v1209
          %1285 = vmatpush1.msra.mxu0 %v1208
          %1286 = vmatprep.subr.mxu0 %v1211
          %1287 = vmatpush1.msra.mxu0 %v1210
          %1288 = vmatprep.subr.mxu0 %v1213
          %1289 = vmatpush1.msra.mxu0 %v1212
          %1290 = vmatprep.subr.mxu0 %v1215
          %1291 = vmatpush1.msra.mxu0 %v1214
          %1292 = vmatprep.subr.mxu0 %v1217
          %1293 = vmatpush1.msra.mxu0 %v1216
          %1294 = vmatprep.subr.mxu0 %v1219
          %1295 = vmatpush1.msra.mxu0 %v1218
          %1296 = vmatprep.subr.mxu0 %v1221
          %1297 = vmatpush1.msra.mxu0 %v1220
          %1298 = vmatprep.subr.mxu0 %v1223
          %1299 = vmatpush1.msra.mxu0 %v1222
          %1300 = vmatprep.subr.mxu0 %v1225
          %1301 = vmatpush1.msra.mxu0 %v1224
          %1302 = vmatprep.subr.mxu0 %v1227
          %1303 = vmatpush1.msra.mxu0 %v1226
          %1304 = vmatprep.subr.mxu0 %v1229
          %1305 = vmatpush1.msra.mxu0 %v1228
          %1306 = vmatprep.subr.mxu0 %v1231
          %1307 = vmatpush1.msra.mxu0 %v1230
          %1308 = vmatprep.subr.mxu0 %v1233
          %1309 = vmatpush1.msra.mxu0 %v1232
          %1310 = vmatprep.subr.mxu0 %v1235
          %1311 = vmatpush1.msra.mxu0 %v1234
          %1312 = vmatprep.subr.mxu0 %v1237
          %1313 = vmatpush1.msra.mxu0 %v1236
          %1314 = vmatprep.subr.mxu0 %v1239
          %1315 = vmatpush1.msra.mxu0 %v1238
          %1316 = vmatprep.subr.mxu0 %v1241
          %1317 = vmatpush1.msra.mxu0 %v1240
          %1318 = vmatprep.subr.mxu0 %v1243
          %1319 = vmatpush1.msra.mxu0 %v1242
          %1320 = vmatprep.subr.mxu0 %v1245
          %1321 = vmatpush1.msra.mxu0 %v1244
          %1322 = vmatprep.subr.mxu0 %v1247
          %1323 = vmatpush1.msra.mxu0 %v1246
          %1324 = vmatprep.subr.mxu0 %v1249
          %1325 = vmatpush1.msra.mxu0 %v1248
          %1326 = vmatprep.subr.mxu0 %v1251
          %1327 = vmatpush1.msra.mxu0 %v1250
          %1328 = vmatprep.subr.mxu0 %v1253
          %1329 = vmatpush1.msra.mxu0 %v1252
          %1330 = vmatprep.mubr.f32.mxu0 %v1187
          %1331 = vmatmul.mubr.f32.gmra.mrb[0].mxu0 %v1186
          %v1332 = vpop.f32.mrb[0].mxu0
          %v1333 = vadd.f32 %v1259, %v1332
          %v1334 = vpop.f32.mrb[0].mxu0
          %v1335 = vadd.f32 %v1263, %v1334
          %1336 = vmatprep.mubr.f32.mxu0 %v1189
          %1337 = vmatmul.mubr.f32.gmra.mrb[0].mxu0 %v1188
          %v1338 = vpop.f32.mrb[0].mxu0
          %v1339 = vadd.f32 %v1259, %v1338
          %v1340 = vpop.f32.mrb[0].mxu0
          %v1341 = vadd.f32 %v1263, %v1340
          %1342 = vdwg.mxu0
          %v1343 = vtanh.pop %v1333
          %v1344 = vtanh.pop %v1335
          %v1345 = vtanh.pop %v1339
          %v1346 = vtanh.pop %v1341
          %v1347 = vld [vmem:[%s622] sm:$0xff]
          %v1348 = vld [vmem:[%s622 + $0x8] sm:$0xff]
          %v1349 = vld [vmem:[%s622 + $0x10] sm:$0xff]
          %v1350 = vld [vmem:[%s622 + $0x18] sm:$0xff]
          %v1351 = vld [vmem:[%s622 + $0x20] sm:$0xff]
          %v1352 = vld [vmem:[%s622 + $0x28] sm:$0xff]
          %v1353 = vld [vmem:[%s622 + $0x30] sm:$0xff]
          %v1354 = vld [vmem:[%s622 + $0x38] sm:$0xff]
          %v1355 = vld [vmem:[%s622 + $0x40] sm:$0xff]
          %v1356 = vld [vmem:[%s622 + $0x48] sm:$0xff]
          %v1357 = vld [vmem:[%s622 + $0x50] sm:$0xff]
          %v1358 = vld [vmem:[%s622 + $0x58] sm:$0xff]
          %v1359 = vld [vmem:[%s622 + $0x60] sm:$0xff]
          %v1360 = vld [vmem:[%s622 + $0x68] sm:$0xff]
          %v1361 = vld [vmem:[%s622 + $0x70] sm:$0xff]
          %v1362 = vld [vmem:[%s622 + $0x78] sm:$0xff]
          %v1363 = vld [vmem:[%s622 + $0x80] sm:$0xff]
          %v1364 = vld [vmem:[%s622 + $0x88] sm:$0xff]
          %v1365 = vld [vmem:[%s622 + $0x90] sm:$0xff]
          %v1366 = vld [vmem:[%s622 + $0x98] sm:$0xff]
          %v1367 = vld [vmem:[%s622 + $0xa0] sm:$0xff]
          %v1368 = vld [vmem:[%s622 + $0xa8] sm:$0xff]
          %v1369 = vld [vmem:[%s622 + $0xb0] sm:$0xff]
          %v1370 = vld [vmem:[%s622 + $0xb8] sm:$0xff]
          %v1371 = vld [vmem:[%s622 + $0xc0] sm:$0xff]
          %v1372 = vld [vmem:[%s622 + $0xc8] sm:$0xff]
          %v1373 = vld [vmem:[%s622 + $0xd0] sm:$0xff]
          %v1374 = vld [vmem:[%s622 + $0xd8] sm:$0xff]
          %v1375 = vld [vmem:[%s622 + $0xe0] sm:$0xff]
          %v1376 = vld [vmem:[%s622 + $0xe8] sm:$0xff]
          %v1377 = vld [vmem:[%s622 + $0xf0] sm:$0xff]
          %v1378 = vld [vmem:[%s622 + $0xf8] sm:$0xff]
          %v1379 = vld [vmem:[%s743] sm:$0x1]
          %v1381 = vlaneseq
          %v1382 = vshrl.u32 %v1381, 7
          %v1383 = vsub.s32 0, %v1382
          %v1384 = vrot.slane %v1379, %v1383
          %1386 = vmatprep.subr.mxu0 0.0
          %1387 = vmatpush1.msra.mxu0 %v1347
          %1388 = vmatprep.subr.mxu0 0.0
          %1389 = vmatpush1.msra.mxu0 %v1348
          %1390 = vmatprep.subr.mxu0 0.0
          %1391 = vmatpush1.msra.mxu0 %v1349
          %1392 = vmatprep.subr.mxu0 0.0
          %1393 = vmatpush1.msra.mxu0 %v1350
          %1394 = vmatprep.subr.mxu0 0.0
          %1395 = vmatpush1.msra.mxu0 %v1351
          %1396 = vmatprep.subr.mxu0 0.0
          %1397 = vmatpush1.msra.mxu0 %v1352
          %1398 = vmatprep.subr.mxu0 0.0
          %1399 = vmatpush1.msra.mxu0 %v1353
          %1400 = vmatprep.subr.mxu0 0.0
          %1401 = vmatpush1.msra.mxu0 %v1354
          %1402 = vmatprep.subr.mxu0 0.0
          %1403 = vmatpush1.msra.mxu0 %v1355
          %1404 = vmatprep.subr.mxu0 0.0
          %1405 = vmatpush1.msra.mxu0 %v1356
          %1406 = vmatprep.subr.mxu0 0.0
          %1407 = vmatpush1.msra.mxu0 %v1357
          %1408 = vmatprep.subr.mxu0 0.0
          %1409 = vmatpush1.msra.mxu0 %v1358
          %1410 = vmatprep.subr.mxu0 0.0
          %1411 = vmatpush1.msra.mxu0 %v1359
          %1412 = vmatprep.subr.mxu0 0.0
          %1413 = vmatpush1.msra.mxu0 %v1360
          %1414 = vmatprep.subr.mxu0 0.0
          %1415 = vmatpush1.msra.mxu0 %v1361
          %1416 = vmatprep.subr.mxu0 0.0
          %1417 = vmatpush1.msra.mxu0 %v1362
          %1418 = vmatprep.subr.mxu0 0.0
          %1419 = vmatpush1.msra.mxu0 %v1363
          %1420 = vmatprep.subr.mxu0 0.0
          %1421 = vmatpush1.msra.mxu0 %v1364
          %1422 = vmatprep.subr.mxu0 0.0
          %1423 = vmatpush1.msra.mxu0 %v1365
          %1424 = vmatprep.subr.mxu0 0.0
          %1425 = vmatpush1.msra.mxu0 %v1366
          %1426 = vmatprep.subr.mxu0 0.0
          %1427 = vmatpush1.msra.mxu0 %v1367
          %1428 = vmatprep.subr.mxu0 0.0
          %1429 = vmatpush1.msra.mxu0 %v1368
          %1430 = vmatprep.subr.mxu0 0.0
          %1431 = vmatpush1.msra.mxu0 %v1369
          %1432 = vmatprep.subr.mxu0 0.0
          %1433 = vmatpush1.msra.mxu0 %v1370
          %1434 = vmatprep.subr.mxu0 0.0
          %1435 = vmatpush1.msra.mxu0 %v1371
          %1436 = vmatprep.subr.mxu0 0.0
          %1437 = vmatpush1.msra.mxu0 %v1372
          %1438 = vmatprep.subr.mxu0 0.0
          %1439 = vmatpush1.msra.mxu0 %v1373
          %1440 = vmatprep.subr.mxu0 0.0
          %1441 = vmatpush1.msra.mxu0 %v1374
          %1442 = vmatprep.subr.mxu0 0.0
          %1443 = vmatpush1.msra.mxu0 %v1375
          %1444 = vmatprep.subr.mxu0 0.0
          %1445 = vmatpush1.msra.mxu0 %v1376
          %1446 = vmatprep.subr.mxu0 0.0
          %1447 = vmatpush1.msra.mxu0 %v1377
          %1448 = vmatprep.subr.mxu0 0.0
          %1449 = vmatpush1.msra.mxu0 %v1378
          %1450 = vmatprep.mubr.f32.mxu0 %v1344
          %1451 = vmatmul.mubr.f32.gmra.mrb[0].mxu0 %v1343
          %v1452 = vpop.f32.mrb[0].mxu0
          %v1453 = vadd.f32 %v1384, %v1452
          %v1454 = vpop.f32.mrb[0].mxu0
          %1455 = vmatprep.mubr.f32.mxu0 %v1346
          %1456 = vmatmul.mubr.f32.gmra.mrb[0].mxu0 %v1345
          %v1457 = vpop.f32.mrb[0].mxu0
          %v1458 = vadd.f32 %v1384, %v1457
          %v1459 = vpop.f32.mrb[0].mxu0
          %1460 = vdwg.mxu0
          %1461 = vst [vmem:[%s709] sm:$0xff] %v1453
          %1462 = vst [vmem:[%s709 + $0x8] sm:$0xff] %v1458
        $region96: #{tpu_custom_call.1} parent=63 // pred_fallthru
          _
        %s1463 = sand.u32 %s359, 1
        %s1464 = scalar_lea.sflag [#allocation7], %s1463
        %s1465 = sand.u32 %s359, 1
        %s1466 = smul.addr %s1465, 16
        %s1467 = scalar_lea.vmem [#allocation16], %s1466
        // Predicated region
        $region97: #{tpu_custom_call.1} parent=63 // pred_check
          %p1468 = pneg %p369
        $region98: #{tpu_custom_call.1} parent=63 // pred_check_branch
          %1470 = sbr.rel (%p1468) target = $region100
        $region99: #{tpu_custom_call.1} parent=63 // pred_region
          %s1471 = smul.u32 2, %s45
          %s1473 = ssub.s32 256, 256
          %1474 = vsyncadd %s1464, %s1473
          %s1475 = smul.addr %s1471, 128
          %s1476 = scalar_lea.hbm %s13, %s1475
          %s1477 = sshll.u32 %s1467, 4
          %s1478 = int_to_ptr.vmem [resolvable:$true] %s1477
          %1483 = dma.vmem_to_hbm [thread:$0]  %s1478, 256, %s1476, %s1464, 128, 128, 8
        $region100: #{tpu_custom_call.1} parent=63 // pred_fallthru
          _
      $region64: #{tpu_custom_call.1} parent=5 // pred_fallthru
        _
      %p1484 = scmp.le.s32.totalorder 2, %s40
      // Predicated region
      $region101: #{tpu_custom_call.1} parent=5 // pred_check
        %p1485 = pneg %p1484
      $region102: #{tpu_custom_call.1} parent=5 // pred_check_branch
        %1487 = sbr.rel (%p1485) target = $region104
      $region103: #{tpu_custom_call.1} parent=5 // pred_region
        %s1488 = ssub.s32 %s40, 2
        // Predicated region
        $region105: #{tpu_custom_call.1} parent=103 // pred_check
          %p1489 = pneg %p375
        $region106: #{tpu_custom_call.1} parent=103 // pred_check_branch
          %1491 = sbr.rel (%p1489) target = $region108
        $region107: #{tpu_custom_call.1} parent=103 // pred_region
          %s1492 = sand.u32 %s360, 1
          %s1493 = scalar_lea.sflag [#allocation7], %s1492
          %s1494 = sand.u32 %s360, 1
          %s1495 = smul.addr %s1494, 16
          %s1496 = scalar_lea.vmem [#allocation16], %s1495
          %1497 = dma.done %s1493, 256
        $region108: #{tpu_custom_call.1} parent=103 // pred_fallthru
          _
      $region104: #{tpu_custom_call.1} parent=5 // pred_fallthru
        _
    $region6: #{tpu_custom_call.1} parent=1 // loop_footer
      %s44 = sadd.s32 1, %s40
    $region7: #{tpu_custom_call.1} parent=1 // loop_footer_branch
      %39 = sbr.rel target = $region3
    $region8: #{tpu_custom_call.1} parent=1 // loop_exit
      _
    %1498 = vsyncpa [#allocation6], 1
    %s1499 = scalar_lea.sflag [#allocation6], 1
    %1500 = vsyncpa %s1499, 1
    %1501 = vsyncpa [#allocation9], 1
    %s1502 = scalar_lea.sflag [#allocation9], 1
    %1503 = vsyncpa %s1502, 1
    %1504 = vsyncpa [#allocation12], 1
    %s1505 = scalar_lea.sflag [#allocation12], 1
    %1506 = vsyncpa %s1505, 1
    %1507 = vsyncpa [#allocation15], 1
    %s1508 = scalar_lea.sflag [#allocation15], 1
    %1509 = vsyncpa %s1508, 1
    %1510 = vsyncpa [#allocation7], 1
    %s1511 = scalar_lea.sflag [#allocation7], 1
    %1512 = vsyncpa %s1511, 1

</llo_original>
